<compile_context>
chip_gen: v7x
topology: tpu7x:2x2x1
jax: 0.10.0
libtpu: 0.0.40
codegen_flags: <defaults>
</compile_context>

<pallas_src>
import functools
import math

import jax
import jax.numpy as jnp
from jax.experimental import pallas as pl
from jax.experimental.pallas import tpu as pltpu

KERNEL_SIZES = (3, 5, 7, 9)
BRANCH_CH = 16
N_CH = 64            # 4 branches * 16 channels
POOL = 5             # MaxPool1d(kernel=5, stride=5) -> n_length*64/5 flattened features
MAX_K = max(KERNEL_SIZES)
PAD = MAX_K // 2
BN_EPS = 1e-5


# ------------------------------ Pallas kernel ------------------------------ #

def _fused_kernel(x_ref, ball_ref, bemb_ref, w1_ref, b1_ref, w2_ref, b2_ref,
                  w3_ref, b3_ref, out_ref):
    """Conv(banded matmuls)+BN+ReLU+MaxPool+Flatten+MLP for one block of nodes."""
    xb = x_ref[...]                                               # (TN, L), already bf16

    # MaxPool1d(5) as a running max over the 5 intra-pool offset groups: one bf16 MXU
    # dot per group, f32 accumulation; peak live intermediate is ~2x(TN, D).
    z = jnp.dot(xb, ball_ref[0], preferred_element_type=jnp.float32)      # (TN, D)
    for q in range(1, POOL):
        z = jnp.maximum(z, jnp.dot(xb, ball_ref[q],
                                   preferred_element_type=jnp.float32))

    # BN(eval) folded into weights/bias; ReLU commutes with the max (monotone).
    embed = jnp.maximum(z + bemb_ref[...], 0.0)                   # (TN, D) channel-major

    # MLP(D, [16, 8, 4]); the largest (D->16) matmul runs bf16 on the MXU, rest tiny f32.
    h = jnp.maximum(
        jnp.dot(embed.astype(jnp.bfloat16), w1_ref[...],
                preferred_element_type=jnp.float32) + b1_ref[...], 0.0)
    h = jnp.maximum(
        jnp.dot(h, w2_ref[...], preferred_element_type=jnp.float32) + b2_ref[...], 0.0)
    out_ref[...] = jnp.dot(h, w3_ref[...],
                           preferred_element_type=jnp.float32) + b3_ref[...]


# --------------------------- parameter preparation -------------------------- #

def prepare_params(params, n_length):
    """One-time weight folding: BN(eval) folded into the conv; conv + pool-offset
    structure expanded into 5 banded column groups B (POOL, L, D), channel-major cols."""
    L = n_length
    assert L % POOL == 0
    Lp = L // POOL
    D = N_CH * Lp

    scale = params["bn_gamma"][0] * jax.lax.rsqrt(params["bn_var"][0] + BN_EPS)   # (64,)
    shift = params["bn_beta"][0] - params["bn_mean"][0] * scale
    w_fold = params["w_conv"] * scale[None, :]                                     # (9, 64)
    b_fold = params["b_conv"][0] * scale + shift                                   # (64,)

    # B[q, t, c*Lp + p] = w_fold[t - 5p - q + PAD, c] if 0 <= tap < 9 else 0
    t = jnp.arange(L)[None, :, None]
    p = jnp.arange(Lp)[None, None, :]
    q = jnp.arange(POOL)[:, None, None]
    j = t - POOL * p - q + PAD                                     # (POOL, L, Lp)
    valid = (j >= 0) & (j < MAX_K)
    taps = jnp.where(valid[..., None],
                     w_fold[jnp.clip(j, 0, MAX_K - 1)], 0.0)       # (POOL, L, Lp, 64)
    b_all = jnp.transpose(taps, (0, 1, 3, 2)).reshape(POOL, L, D).astype(jnp.bfloat16)
    b_embed = jnp.repeat(b_fold, Lp).reshape(1, D).astype(jnp.float32)

    return dict(B=b_all, b_embed=b_embed,
                w1=params["w1"].astype(jnp.bfloat16), b1=params["b1"],
                w2=params["w2"], b2=params["b2"],
                w3=params["w3"], b3=params["b3"])


# --------------------------------- wrapper ---------------------------------- #

def _hardware_budget():
    """Row-tile cap + scoped-VMEM limit derived from the actual chip generation."""
    try:
        cap = int(getattr(pltpu.get_tpu_info(), "vmem_capacity_bytes",
                          64 * 1024 * 1024))
    except Exception:
        cap = 64 * 1024 * 1024                      # v7x-safe fallback
    max_row_tile = 1024 if cap >= 100 * 1024 * 1024 else 512   # v5e/v6e vs v7x
    vmem_limit = min(cap // 2, 100 * 1024 * 1024)              # 64 MiB / 32 MiB
    return max_row_tile, vmem_limit


def _choose_row_tiling(n, max_row_tile):
    """Row tile (multiple of 8, <= cap) with >= 2 grid steps so v7x's 2 TCs both work."""
    half = -(-n // 2)
    tn = max(8, min(max_row_tile, -(-half // 8) * 8))
    n_pad = -(-n // tn) * tn
    if n_pad // tn < 2:
        n_pad = 2 * tn
    return tn, n_pad


def eeg_gat_ablation_forward(x, edge_index, batch, prep):
    """Forward of EEG_GAT_ablation: returns (mlp_out, 0). edge_index/batch unused."""
    del edge_index, batch
    N, c_in, L = x.shape
    assert c_in == 1 and L == prep["B"].shape[1]
    D = prep["b_embed"].shape[1]

    max_row_tile, vmem_limit = _hardware_budget()
    tn, n_pad = _choose_row_tiling(N, max_row_tile)

    x2 = x[:, 0, :].astype(jnp.bfloat16)                           # (N, L) bf16, lane-dense
    if n_pad != N:
        x2 = jnp.pad(x2, ((0, n_pad - N), (0, 0)))                 # explicit pad (no OOB reads)

    full2 = lambda i: (0, 0)
    cost = pl.CostEstimate(
        flops=2 * n_pad * (POOL * L * D + D * 16 + 16 * 8 + 8 * 4),
        transcendentals=0,
        bytes_accessed=(n_pad * L * 2 + POOL * L * D * 2 + D * 16 * 2
                        + (D + 16 + 16 * 8 + 8 + 8 * 4 + 4) * 4 + n_pad * 4 * 4))

    out = pl.pallas_call(
        _fused_kernel,
        out_shape=jax.ShapeDtypeStruct((n_pad, 4), jnp.float32),
        grid=(n_pad // tn,),
        in_specs=[
            pl.BlockSpec((tn, L), lambda i: (i, 0)),               # x block (bf16)
            pl.BlockSpec((POOL, L, D), lambda i: (0, 0, 0)),       # banded conv groups (bf16)
            pl.BlockSpec((1, D), full2),                           # folded conv/BN bias
            pl.BlockSpec((D, 16), full2),                          # w1 (bf16)
            pl.BlockSpec((1, 16), full2),
            pl.BlockSpec((16, 8), full2),
            pl.BlockSpec((1, 8), full2),
            pl.BlockSpec((8, 4), full2),
            pl.BlockSpec((1, 4), full2),
        ],
        out_specs=pl.BlockSpec((tn, 4), lambda i: (i, 0)),
        compiler_params=pltpu.CompilerParams(
            dimension_semantics=("parallel",),                     # v7x: 2 TCs split nodes
            vmem_limit_bytes=vmem_limit),
        cost_estimate=cost,
    )(x2, prep["B"], prep["b_embed"], prep["w1"], prep["b1"],
      prep["w2"], prep["b2"], prep["w3"], prep["b3"])

    if n_pad != N:
        out = out[:N]
    return out, 0


# --------------------------- deterministic params --------------------------- #

def init_params(n_length, key):
    Lp = n_length // POOL
    D = N_CH * Lp
    keys = jax.random.split(key, 11)
    # Embed each branch's (k, 16) taps into the shared 9-tap conv weight (centered).
    w_conv = jnp.zeros((MAX_K, N_CH), jnp.float32)
    for b_idx, k in enumerate(KERNEL_SIZES):
        wb = jax.random.normal(keys[b_idx], (k, BRANCH_CH), jnp.float32) / math.sqrt(k)
        r0 = PAD - k // 2
        w_conv = w_conv.at[r0:r0 + k, b_idx * BRANCH_CH:(b_idx + 1) * BRANCH_CH].set(wb)
    return dict(
        w_conv=w_conv,
        b_conv=0.1 * jax.random.normal(keys[4], (1, N_CH), jnp.float32),
        bn_gamma=jnp.ones((1, N_CH), jnp.float32),
        bn_beta=jnp.zeros((1, N_CH), jnp.float32),
        bn_mean=jnp.zeros((1, N_CH), jnp.float32),
        bn_var=jnp.ones((1, N_CH), jnp.float32),
        w1=jax.random.normal(keys[5], (D, 16), jnp.float32) / math.sqrt(D),
        b1=0.1 * jax.random.normal(keys[6], (1, 16), jnp.float32),
        w2=jax.random.normal(keys[7], (16, 8), jnp.float32) / math.sqrt(16),
        b2=0.1 * jax.random.normal(keys[8], (1, 8), jnp.float32),
        w3=jax.random.normal(keys[9], (8, 4), jnp.float32) / math.sqrt(8),
        b3=0.1 * jax.random.normal(keys[10], (1, 4), jnp.float32),
    )


# ------------------------------ pure-JAX reference -------------------------- #

def reference_forward(x, params):
    N, _, L = x.shape
    Lp = L // POOL
    outs = []
    for b_idx, k in enumerate(KERNEL_SIZES):
        r0 = PAD - k // 2
        wb = params["w_conv"][r0:r0 + k, b_idx * BRANCH_CH:(b_idx + 1) * BRANCH_CH]   # (k, 16)
        w_oiw = jnp.transpose(wb, (1, 0))[:, None, :]                                  # (16, 1, k)
        conv = jax.lax.conv_general_dilated(
            x.astype(jnp.float32), w_oiw, window_strides=(1,),
            padding=[(k // 2, k // 2)],
            dimension_numbers=("NCW", "OIW", "NCW"))
        outs.append(conv)
    y = jnp.concatenate(outs, axis=1) + params["b_conv"].reshape(1, N_CH, 1)
    scale = params["bn_gamma"] / jnp.sqrt(params["bn_var"] + BN_EPS)
    shift = params["bn_beta"] - params["bn_mean"] * scale
    y = jnp.maximum(y * scale.reshape(1, N_CH, 1) + shift.reshape(1, N_CH, 1), 0.0)
    y = y.reshape(N, N_CH, Lp, POOL).max(axis=-1)           # MaxPool1d(5)
    x_embed = y.reshape(N, N_CH * Lp)                       # nn.Flatten (NCL, channel-major)
    h = jnp.maximum(x_embed @ params["w1"] + params["b1"], 0.0)
    h = jnp.maximum(h @ params["w2"] + params["b2"], 0.0)
    return h @ params["w3"] + params["b3"]


if __name__ == "__main__":
    n_length = 40                    # so that n_length * 64 / 5 = 512
    n_nodes = 8                      # e.g. 2 graphs x 4 electrodes
    key = jax.random.PRNGKey(0)
    kx, kp = jax.random.split(key)

    x = jax.random.normal(kx, (n_nodes, 1, n_length), jnp.float32)
    edge_index = jnp.zeros((2, 16), jnp.int32)                        # unused by ablation forward
    batch = jnp.repeat(jnp.arange(2, dtype=jnp.int32), n_nodes // 2)  # unused by ablation forward
    params = init_params(n_length, kp)
    prep = prepare_params(params, n_length)     # one-time BN folding + banded-matrix expansion

    fwd = jax.jit(functools.partial(eeg_gat_ablation_forward, prep=prep))
    out, zero = fwd(x, edge_index, batch)
    out = jax.block_until_ready(out)

    assert out.shape == (n_nodes, 4) and zero == 0
    ref = reference_forward(x, params)
    max_err = float(jnp.max(jnp.abs(out - ref)))
    if not max_err < 5e-2:
        raise AssertionError(f"kernel/reference mismatch, max abs err = {max_err}")
    print("KERNEL_OK")
</pallas_src>

<mosaic_0001>
module attributes {stable_mosaic.version = 11 : i64} {
  func.func @_fused_kernel(%arg0: i32, %arg1: memref<8x40xbf16, #tpu.memory_space<vmem>>, %arg2: memref<5x40x512xbf16, #tpu.memory_space<vmem>>, %arg3: memref<1x512xf32, #tpu.memory_space<vmem>>, %arg4: memref<512x16xbf16, #tpu.memory_space<vmem>>, %arg5: memref<1x16xf32, #tpu.memory_space<vmem>>, %arg6: memref<16x8xf32, #tpu.memory_space<vmem>>, %arg7: memref<1x8xf32, #tpu.memory_space<vmem>>, %arg8: memref<8x4xf32, #tpu.memory_space<vmem>>, %arg9: memref<1x4xf32, #tpu.memory_space<vmem>>, %arg10: memref<8x4xf32, #tpu.memory_space<vmem>>) attributes {dimension_semantics = [#tpu.dimension_semantics<parallel>], iteration_bounds = array<i64: 2>, scalar_prefetch = 0 : i64, scratch_operands = 0 : i64, tpu.core_type = #tpu.core_type<tc>, window_params = [{transform_indices = @transform_0, window_bounds = array<i64: 8, 40>}, {pipeline_mode = #tpu.pipeline_mode<synchronous>, transform_indices = @transform_1, window_bounds = array<i64: 5, 40, 512>}, {pipeline_mode = #tpu.pipeline_mode<synchronous>, transform_indices = @transform_2, window_bounds = array<i64: 1, 512>}, {pipeline_mode = #tpu.pipeline_mode<synchronous>, transform_indices = @transform_3, window_bounds = array<i64: 512, 16>}, {pipeline_mode = #tpu.pipeline_mode<synchronous>, transform_indices = @transform_4, window_bounds = array<i64: 1, 16>}, {pipeline_mode = #tpu.pipeline_mode<synchronous>, transform_indices = @transform_5, window_bounds = array<i64: 16, 8>}, {pipeline_mode = #tpu.pipeline_mode<synchronous>, transform_indices = @transform_6, window_bounds = array<i64: 1, 8>}, {pipeline_mode = #tpu.pipeline_mode<synchronous>, transform_indices = @transform_7, window_bounds = array<i64: 8, 4>}, {pipeline_mode = #tpu.pipeline_mode<synchronous>, transform_indices = @transform_8, window_bounds = array<i64: 1, 4>}, {transform_indices = @transform_9, window_bounds = array<i64: 8, 4>}]} {
    %c0 = arith.constant 0 : index
    %c0_0 = arith.constant 0 : index
    %0 = vector.load %arg1[%c0, %c0_0] : memref<8x40xbf16, #tpu.memory_space<vmem>>, vector<8x40xbf16>
    %c0_1 = arith.constant 0 : index
    %c0_2 = arith.constant 0 : index
    %c0_3 = arith.constant 0 : index
    %1 = vector.load %arg2[%c0_1, %c0_2, %c0_3] : memref<5x40x512xbf16, #tpu.memory_space<vmem>>, vector<1x40x512xbf16>
    %2 = vector.shape_cast %1 : vector<1x40x512xbf16> to vector<40x512xbf16>
    %cst = arith.constant dense<0.000000e+00> : vector<8x512xf32>
    %3 = tpu.matmul %0, %2, %cst {dimension_numbers = #tpu.dot_dimension_numbers<[1], [0], [0], [1], [0, 0, 1, 1], [], []>} : vector<8x40xbf16>, vector<40x512xbf16>, vector<8x512xf32> -> vector<8x512xf32>
    %c1 = arith.constant 1 : index
    %c0_4 = arith.constant 0 : index
    %c0_5 = arith.constant 0 : index
    %4 = vector.load %arg2[%c1, %c0_4, %c0_5] : memref<5x40x512xbf16, #tpu.memory_space<vmem>>, vector<1x40x512xbf16>
    %5 = vector.shape_cast %4 : vector<1x40x512xbf16> to vector<40x512xbf16>
    %cst_6 = arith.constant dense<0.000000e+00> : vector<8x512xf32>
    %6 = tpu.matmul %0, %5, %cst_6 {dimension_numbers = #tpu.dot_dimension_numbers<[1], [0], [0], [1], [0, 0, 1, 1], [], []>} : vector<8x40xbf16>, vector<40x512xbf16>, vector<8x512xf32> -> vector<8x512xf32>
    %7 = arith.maximumf %3, %6 : vector<8x512xf32>
    %c2 = arith.constant 2 : index
    %c0_7 = arith.constant 0 : index
    %c0_8 = arith.constant 0 : index
    %8 = vector.load %arg2[%c2, %c0_7, %c0_8] : memref<5x40x512xbf16, #tpu.memory_space<vmem>>, vector<1x40x512xbf16>
    %9 = vector.shape_cast %8 : vector<1x40x512xbf16> to vector<40x512xbf16>
    %cst_9 = arith.constant dense<0.000000e+00> : vector<8x512xf32>
    %10 = tpu.matmul %0, %9, %cst_9 {dimension_numbers = #tpu.dot_dimension_numbers<[1], [0], [0], [1], [0, 0, 1, 1], [], []>} : vector<8x40xbf16>, vector<40x512xbf16>, vector<8x512xf32> -> vector<8x512xf32>
    %11 = arith.maximumf %7, %10 : vector<8x512xf32>
    %c3 = arith.constant 3 : index
    %c0_10 = arith.constant 0 : index
    %c0_11 = arith.constant 0 : index
    %12 = vector.load %arg2[%c3, %c0_10, %c0_11] : memref<5x40x512xbf16, #tpu.memory_space<vmem>>, vector<1x40x512xbf16>
    %13 = vector.shape_cast %12 : vector<1x40x512xbf16> to vector<40x512xbf16>
    %cst_12 = arith.constant dense<0.000000e+00> : vector<8x512xf32>
    %14 = tpu.matmul %0, %13, %cst_12 {dimension_numbers = #tpu.dot_dimension_numbers<[1], [0], [0], [1], [0, 0, 1, 1], [], []>} : vector<8x40xbf16>, vector<40x512xbf16>, vector<8x512xf32> -> vector<8x512xf32>
    %15 = arith.maximumf %11, %14 : vector<8x512xf32>
    %c4 = arith.constant 4 : index
    %c0_13 = arith.constant 0 : index
    %c0_14 = arith.constant 0 : index
    %16 = vector.load %arg2[%c4, %c0_13, %c0_14] : memref<5x40x512xbf16, #tpu.memory_space<vmem>>, vector<1x40x512xbf16>
    %17 = vector.shape_cast %16 : vector<1x40x512xbf16> to vector<40x512xbf16>
    %cst_15 = arith.constant dense<0.000000e+00> : vector<8x512xf32>
    %18 = tpu.matmul %0, %17, %cst_15 {dimension_numbers = #tpu.dot_dimension_numbers<[1], [0], [0], [1], [0, 0, 1, 1], [], []>} : vector<8x40xbf16>, vector<40x512xbf16>, vector<8x512xf32> -> vector<8x512xf32>
    %19 = arith.maximumf %15, %18 : vector<8x512xf32>
    %c0_16 = arith.constant 0 : index
    %c0_17 = arith.constant 0 : index
    %20 = vector.load %arg3[%c0_16, %c0_17] : memref<1x512xf32, #tpu.memory_space<vmem>>, vector<1x512xf32>
    %21 = vector.broadcast %20 : vector<1x512xf32> to vector<8x512xf32>
    %22 = arith.addf %19, %21 : vector<8x512xf32>
    %cst_18 = arith.constant 0.000000e+00 : f32
    %23 = vector.broadcast %cst_18 : f32 to vector<8x512xf32>
    %24 = arith.maximumf %22, %23 : vector<8x512xf32>
    %25 = arith.truncf %24 : vector<8x512xf32> to vector<8x512xbf16>
    %c0_19 = arith.constant 0 : index
    %c0_20 = arith.constant 0 : index
    %26 = vector.load %arg4[%c0_19, %c0_20] : memref<512x16xbf16, #tpu.memory_space<vmem>>, vector<512x16xbf16>
    %cst_21 = arith.constant dense<0.000000e+00> : vector<8x16xf32>
    %27 = tpu.matmul %25, %26, %cst_21 {dimension_numbers = #tpu.dot_dimension_numbers<[1], [0], [0], [1], [0, 0, 1, 1], [], []>} : vector<8x512xbf16>, vector<512x16xbf16>, vector<8x16xf32> -> vector<8x16xf32>
    %c0_22 = arith.constant 0 : index
    %c0_23 = arith.constant 0 : index
    %28 = vector.load %arg5[%c0_22, %c0_23] : memref<1x16xf32, #tpu.memory_space<vmem>>, vector<1x16xf32>
    %29 = vector.broadcast %28 : vector<1x16xf32> to vector<8x16xf32>
    %30 = arith.addf %27, %29 : vector<8x16xf32>
    %cst_24 = arith.constant 0.000000e+00 : f32
    %31 = vector.broadcast %cst_24 : f32 to vector<8x16xf32>
    %32 = arith.maximumf %30, %31 : vector<8x16xf32>
    %c0_25 = arith.constant 0 : index
    %c0_26 = arith.constant 0 : index
    %33 = vector.load %arg6[%c0_25, %c0_26] : memref<16x8xf32, #tpu.memory_space<vmem>>, vector<16x8xf32>
    %cst_27 = arith.constant dense<0.000000e+00> : vector<8x8xf32>
    %34 = tpu.matmul %32, %33, %cst_27 {dimension_numbers = #tpu.dot_dimension_numbers<[1], [0], [0], [1], [0, 0, 1, 1], [], []>} : vector<8x16xf32>, vector<16x8xf32>, vector<8x8xf32> -> vector<8x8xf32>
    %c0_28 = arith.constant 0 : index
    %c0_29 = arith.constant 0 : index
    %35 = vector.load %arg7[%c0_28, %c0_29] : memref<1x8xf32, #tpu.memory_space<vmem>>, vector<1x8xf32>
    %36 = vector.broadcast %35 : vector<1x8xf32> to vector<8x8xf32>
    %37 = arith.addf %34, %36 : vector<8x8xf32>
    %cst_30 = arith.constant 0.000000e+00 : f32
    %38 = vector.broadcast %cst_30 : f32 to vector<8x8xf32>
    %39 = arith.maximumf %37, %38 : vector<8x8xf32>
    %c0_31 = arith.constant 0 : index
    %c0_32 = arith.constant 0 : index
    %40 = vector.load %arg8[%c0_31, %c0_32] : memref<8x4xf32, #tpu.memory_space<vmem>>, vector<8x4xf32>
    %cst_33 = arith.constant dense<0.000000e+00> : vector<8x4xf32>
    %41 = tpu.matmul %39, %40, %cst_33 {dimension_numbers = #tpu.dot_dimension_numbers<[1], [0], [0], [1], [0, 0, 1, 1], [], []>} : vector<8x8xf32>, vector<8x4xf32>, vector<8x4xf32> -> vector<8x4xf32>
    %c0_34 = arith.constant 0 : index
    %c0_35 = arith.constant 0 : index
    %42 = vector.load %arg9[%c0_34, %c0_35] : memref<1x4xf32, #tpu.memory_space<vmem>>, vector<1x4xf32>
    %43 = vector.broadcast %42 : vector<1x4xf32> to vector<8x4xf32>
    %44 = arith.addf %41, %43 : vector<8x4xf32>
    %c0_36 = arith.constant 0 : index
    %c0_37 = arith.constant 0 : index
    %45 = vector.load %arg10[%c0_36, %c0_37] : memref<8x4xf32, #tpu.memory_space<vmem>>, vector<8x4xf32>
    tpu.vector_store %arg10[%c0_36, %c0_37], %44 {strides = array<i32>} : memref<8x4xf32, #tpu.memory_space<vmem>>, vector<8x4xf32>,
    return
  }
  func.func @transform_0(%arg0: i32) -> (i32, i32) {
    %c0_i32 = arith.constant 0 : i32
    %c0_i32_0 = arith.constant 0 : i32
    return %arg0, %c0_i32 : i32, i32
  }
  func.func @transform_1(%arg0: i32) -> (i32, i32, i32) {
    %c0_i32 = arith.constant 0 : i32
    %c0_i32_0 = arith.constant 0 : i32
    %c0_i32_1 = arith.constant 0 : i32
    %c0_i32_2 = arith.constant 0 : i32
    return %c0_i32, %c0_i32_0, %c0_i32_1 : i32, i32, i32
  }
  func.func @transform_2(%arg0: i32) -> (i32, i32) {
    %c0_i32 = arith.constant 0 : i32
    %c0_i32_0 = arith.constant 0 : i32
    %c0_i32_1 = arith.constant 0 : i32
    return %c0_i32, %c0_i32_0 : i32, i32
  }
  func.func @transform_3(%arg0: i32) -> (i32, i32) {
    %c0_i32 = arith.constant 0 : i32
    %c0_i32_0 = arith.constant 0 : i32
    %c0_i32_1 = arith.constant 0 : i32
    return %c0_i32, %c0_i32_0 : i32, i32
  }
  func.func @transform_4(%arg0: i32) -> (i32, i32) {
    %c0_i32 = arith.constant 0 : i32
    %c0_i32_0 = arith.constant 0 : i32
    %c0_i32_1 = arith.constant 0 : i32
    return %c0_i32, %c0_i32_0 : i32, i32
  }
  func.func @transform_5(%arg0: i32) -> (i32, i32) {
    %c0_i32 = arith.constant 0 : i32
    %c0_i32_0 = arith.constant 0 : i32
    %c0_i32_1 = arith.constant 0 : i32
    return %c0_i32, %c0_i32_0 : i32, i32
  }
  func.func @transform_6(%arg0: i32) -> (i32, i32) {
    %c0_i32 = arith.constant 0 : i32
    %c0_i32_0 = arith.constant 0 : i32
    %c0_i32_1 = arith.constant 0 : i32
    return %c0_i32, %c0_i32_0 : i32, i32
  }
  func.func @transform_7(%arg0: i32) -> (i32, i32) {
    %c0_i32 = arith.constant 0 : i32
    %c0_i32_0 = arith.constant 0 : i32
    %c0_i32_1 = arith.constant 0 : i32
    return %c0_i32, %c0_i32_0 : i32, i32
  }
  func.func @transform_8(%arg0: i32) -> (i32, i32) {
    %c0_i32 = arith.constant 0 : i32
    %c0_i32_0 = arith.constant 0 : i32
    %c0_i32_1 = arith.constant 0 : i32
    return %c0_i32, %c0_i32_0 : i32, i32
  }
  func.func @transform_9(%arg0: i32) -> (i32, i32) {
    %c0_i32 = arith.constant 0 : i32
    %c0_i32_0 = arith.constant 0 : i32
    return %arg0, %c0_i32 : i32, i32
  }
}

</mosaic_0001>

<llo_original>
// kernel: eeg_gat_ablation_forward.1
$region0: #{eeg_gat_ablation_forward.1}
  #allocation0 [shape = 'u32[]', space=smem, size = 0x4, offset = 0x4, fixed_abs, tag = 'smem constant byte address 0x4 - core index']
  #allocation1 [shape = 'u32[144,128]{1,0:T(1,128)}', space=vmem, size = 0x12000, scoped, tag = 'internal scratch']
  %s0 = inlined_call_operand.vmem [shape: bf16[16,40], index: 0, kind: input, shape index: {}]
  %s1 = inlined_call_operand.hbm [shape: bf16[5,40,512], index: 1, kind: input, shape index: {}]
  %s2 = inlined_call_operand.vmem [shape: f32[1,512], index: 2, kind: input, shape index: {}]
  %s3 = inlined_call_operand.hbm [shape: bf16[512,16], index: 3, kind: input, shape index: {}]
  %s4 = inlined_call_operand.vmem [shape: f32[1,16], index: 4, kind: input, shape index: {}]
  %s5 = inlined_call_operand.vmem [shape: f32[16,8], index: 5, kind: input, shape index: {}]
  %s6 = inlined_call_operand.vmem [shape: f32[1,8], index: 6, kind: input, shape index: {}]
  %s7 = inlined_call_operand.vmem [shape: f32[8,4], index: 7, kind: input, shape index: {}]
  %s8 = inlined_call_operand.vmem [shape: f32[1,4], index: 8, kind: input, shape index: {}]
  %s9 = inlined_call_operand.vmem [shape: f32[16,4], index: 9, kind: output, shape index: {}]
  %s10 = sld [smem:[#allocation0]]
  $region77: #{eeg_gat_ablation_forward.1} parent=0
    _
  %s12 = ssub.s32 1, %s10
  %s13 = scalar_select 0, %s12, %s10
  $region1: #{eeg_gat_ablation_forward.1} parent=0
    #allocation2 [shape = 'u8[204800]{0}', space=vmem, size = 0x32000, scoped, tag = 'input window, operand 1, single buffered']
    #allocation3 [shape = 's32[2]{0}', space=sflag, size = 0x8, scoped, tag = 'scoped memory for eeg_gat_ablation_forward.1']
    #allocation4 [shape = 'u8[131072]{0}', space=vmem, size = 0x20000, scoped, tag = 'input window, operand 3, single buffered']
    #allocation5 [shape = 's32[1]{0}', space=sflag, size = 0x4, scoped, tag = 'scoped memory for eeg_gat_ablation_forward.1']
    %14 = vsyncpa [#allocation3], 0
    %15 = vsyncpa [#allocation5], 0
    loop: start=0, step=1, limit=4
    $region2: #{eeg_gat_ablation_forward.1} parent=1 // loop_pre_header
      _
    $region3: #{eeg_gat_ablation_forward.1} parent=1 // loop_header
      %s17 = sphi 0, %s21
      %p18 = scmp.ge.s32.totalorder %s17, 4
      %s27 = sphi 0, %s29
      %s30 = sphi 0, %s27
      %s31 = sphi 0, %s30
      %s47 = sphi 0, %s31
      %s51 = sphi 0, %s51
      %s53 = sphi 0, %s51
      %s54 = sphi 0, %s53
      %s68 = sphi 0, %s54
      %s72 = sphi 0, %s72
      %s74 = sphi 0, %s72
      %s75 = sphi 0, %s74
      %s89 = sphi 0, %s75
      %s93 = sphi 0, %s93
      %s95 = sphi 0, %s93
      %s96 = sphi 0, %s95
      %s110 = sphi 0, %s96
      %s114 = sphi 0, %s114
      %s116 = sphi 0, %s114
      %s117 = sphi 0, %s116
      %s131 = sphi 0, %s117
      %s135 = sphi 0, %s135
      %s137 = sphi 0, %s135
      %s138 = sphi 0, %s137
      %s152 = sphi 0, %s138
      %s156 = sphi 0, %s156
      %s158 = sphi 0, %s156
      %s159 = sphi 0, %s158
      %s173 = sphi 0, %s159
      %s177 = sphi 0, %s177
      %s179 = sphi 0, %s177
      %s180 = sphi 0, %s179
      %s194 = sphi 0, %s180
      %s198 = sphi 0, %s198
      %s200 = sphi 0, %s198
      %s201 = sphi 0, %s200
      %s215 = sphi 0, %s201
      %s221 = sphi 0, %s223
      %s224 = sphi 0, %s221
      %s225 = sphi 0, %s224
      %s241 = sphi 0, %s225
    $region4: #{eeg_gat_ablation_forward.1} parent=1 // loop_header_branch
      %20 = sbr.rel (%p18) target = $region8
    $region5: #{eeg_gat_ablation_forward.1} parent=1 // loop_body
      %s22 = ssub.s32 %s17, 1
      %s23 = ssub.s32 %s17, 2
      %s24 = sadd.s32 %s17, 1
      %s25 = ssub.s32 %s17, %s24
      %p26 = scmp.eq.s32.totalorder %s25, 0
      %s28 = sadd.s32 %s27, 1
      %s29 = scalar_select %p26, %s27, %s28
      %p32 = pneg %p26
      %p33 = scmp.eq.s32.totalorder %s17, 1
      %p34 = por %p32, %p33
      %p35 = scmp.ne.s32.totalorder %s27, %s30
      %p36 = scmp.eq.s32.totalorder %s17, 0
      %p37 = por %p35, %p36
      %p38 = scmp.ne.s32.totalorder %s27, %s30
      %p39 = scmp.eq.s32.totalorder %s22, 1
      %p40 = por %p38, %p39
      %p41 = scmp.ne.s32.totalorder %s30, %s31
      %p42 = scmp.eq.s32.totalorder %s22, 0
      %p43 = por %p41, %p42
      %p44 = scmp.ne.s32.totalorder %s30, %s31
      %p45 = scmp.eq.s32.totalorder %s23, 1
      %p46 = por %p44, %p45
      %p48 = scmp.ne.s32.totalorder %s31, %s47
      %p49 = scmp.eq.s32.totalorder %s23, 0
      %p50 = por %p48, %p49
      %s52 = sadd.s32 %s51, 1
      %p55 = scmp.eq.s32.totalorder %s17, 1
      %p56 = scmp.ne.s32.totalorder %s51, %s53
      %p57 = scmp.eq.s32.totalorder %s17, 0
      %p58 = por %p56, %p57
      %p59 = scmp.ne.s32.totalorder %s51, %s53
      %p60 = scmp.eq.s32.totalorder %s22, 1
      %p61 = por %p59, %p60
      %p62 = scmp.ne.s32.totalorder %s53, %s54
      %p63 = scmp.eq.s32.totalorder %s22, 0
      %p64 = por %p62, %p63
      %p65 = scmp.ne.s32.totalorder %s53, %s54
      %p66 = scmp.eq.s32.totalorder %s23, 1
      %p67 = por %p65, %p66
      %p69 = scmp.ne.s32.totalorder %s54, %s68
      %p70 = scmp.eq.s32.totalorder %s23, 0
      %p71 = por %p69, %p70
      %s73 = sadd.s32 %s72, 1
      %p76 = scmp.eq.s32.totalorder %s17, 1
      %p77 = scmp.ne.s32.totalorder %s72, %s74
      %p78 = scmp.eq.s32.totalorder %s17, 0
      %p79 = por %p77, %p78
      %p80 = scmp.ne.s32.totalorder %s72, %s74
      %p81 = scmp.eq.s32.totalorder %s22, 1
      %p82 = por %p80, %p81
      %p83 = scmp.ne.s32.totalorder %s74, %s75
      %p84 = scmp.eq.s32.totalorder %s22, 0
      %p85 = por %p83, %p84
      %p86 = scmp.ne.s32.totalorder %s74, %s75
      %p87 = scmp.eq.s32.totalorder %s23, 1
      %p88 = por %p86, %p87
      %p90 = scmp.ne.s32.totalorder %s75, %s89
      %p91 = scmp.eq.s32.totalorder %s23, 0
      %p92 = por %p90, %p91
      %s94 = sadd.s32 %s93, 1
      %p97 = scmp.eq.s32.totalorder %s17, 1
      %p98 = scmp.ne.s32.totalorder %s93, %s95
      %p99 = scmp.eq.s32.totalorder %s17, 0
      %p100 = por %p98, %p99
      %p101 = scmp.ne.s32.totalorder %s93, %s95
      %p102 = scmp.eq.s32.totalorder %s22, 1
      %p103 = por %p101, %p102
      %p104 = scmp.ne.s32.totalorder %s95, %s96
      %p105 = scmp.eq.s32.totalorder %s22, 0
      %p106 = por %p104, %p105
      %p107 = scmp.ne.s32.totalorder %s95, %s96
      %p108 = scmp.eq.s32.totalorder %s23, 1
      %p109 = por %p107, %p108
      %p111 = scmp.ne.s32.totalorder %s96, %s110
      %p112 = scmp.eq.s32.totalorder %s23, 0
      %p113 = por %p111, %p112
      %s115 = sadd.s32 %s114, 1
      %p118 = scmp.eq.s32.totalorder %s17, 1
      %p119 = scmp.ne.s32.totalorder %s114, %s116
      %p120 = scmp.eq.s32.totalorder %s17, 0
      %p121 = por %p119, %p120
      %p122 = scmp.ne.s32.totalorder %s114, %s116
      %p123 = scmp.eq.s32.totalorder %s22, 1
      %p124 = por %p122, %p123
      %p125 = scmp.ne.s32.totalorder %s116, %s117
      %p126 = scmp.eq.s32.totalorder %s22, 0
      %p127 = por %p125, %p126
      %p128 = scmp.ne.s32.totalorder %s116, %s117
      %p129 = scmp.eq.s32.totalorder %s23, 1
      %p130 = por %p128, %p129
      %p132 = scmp.ne.s32.totalorder %s117, %s131
      %p133 = scmp.eq.s32.totalorder %s23, 0
      %p134 = por %p132, %p133
      %s136 = sadd.s32 %s135, 1
      %p139 = scmp.eq.s32.totalorder %s17, 1
      %p140 = scmp.ne.s32.totalorder %s135, %s137
      %p141 = scmp.eq.s32.totalorder %s17, 0
      %p142 = por %p140, %p141
      %p143 = scmp.ne.s32.totalorder %s135, %s137
      %p144 = scmp.eq.s32.totalorder %s22, 1
      %p145 = por %p143, %p144
      %p146 = scmp.ne.s32.totalorder %s137, %s138
      %p147 = scmp.eq.s32.totalorder %s22, 0
      %p148 = por %p146, %p147
      %p149 = scmp.ne.s32.totalorder %s137, %s138
      %p150 = scmp.eq.s32.totalorder %s23, 1
      %p151 = por %p149, %p150
      %p153 = scmp.ne.s32.totalorder %s138, %s152
      %p154 = scmp.eq.s32.totalorder %s23, 0
      %p155 = por %p153, %p154
      %s157 = sadd.s32 %s156, 1
      %p160 = scmp.eq.s32.totalorder %s17, 1
      %p161 = scmp.ne.s32.totalorder %s156, %s158
      %p162 = scmp.eq.s32.totalorder %s17, 0
      %p163 = por %p161, %p162
      %p164 = scmp.ne.s32.totalorder %s156, %s158
      %p165 = scmp.eq.s32.totalorder %s22, 1
      %p166 = por %p164, %p165
      %p167 = scmp.ne.s32.totalorder %s158, %s159
      %p168 = scmp.eq.s32.totalorder %s22, 0
      %p169 = por %p167, %p168
      %p170 = scmp.ne.s32.totalorder %s158, %s159
      %p171 = scmp.eq.s32.totalorder %s23, 1
      %p172 = por %p170, %p171
      %p174 = scmp.ne.s32.totalorder %s159, %s173
      %p175 = scmp.eq.s32.totalorder %s23, 0
      %p176 = por %p174, %p175
      %s178 = sadd.s32 %s177, 1
      %p181 = scmp.eq.s32.totalorder %s17, 1
      %p182 = scmp.ne.s32.totalorder %s177, %s179
      %p183 = scmp.eq.s32.totalorder %s17, 0
      %p184 = por %p182, %p183
      %p185 = scmp.ne.s32.totalorder %s177, %s179
      %p186 = scmp.eq.s32.totalorder %s22, 1
      %p187 = por %p185, %p186
      %p188 = scmp.ne.s32.totalorder %s179, %s180
      %p189 = scmp.eq.s32.totalorder %s22, 0
      %p190 = por %p188, %p189
      %p191 = scmp.ne.s32.totalorder %s179, %s180
      %p192 = scmp.eq.s32.totalorder %s23, 1
      %p193 = por %p191, %p192
      %p195 = scmp.ne.s32.totalorder %s180, %s194
      %p196 = scmp.eq.s32.totalorder %s23, 0
      %p197 = por %p195, %p196
      %s199 = sadd.s32 %s198, 1
      %p202 = scmp.eq.s32.totalorder %s17, 1
      %p203 = scmp.ne.s32.totalorder %s198, %s200
      %p204 = scmp.eq.s32.totalorder %s17, 0
      %p205 = por %p203, %p204
      %p206 = scmp.ne.s32.totalorder %s198, %s200
      %p207 = scmp.eq.s32.totalorder %s22, 1
      %p208 = por %p206, %p207
      %p209 = scmp.ne.s32.totalorder %s200, %s201
      %p210 = scmp.eq.s32.totalorder %s22, 0
      %p211 = por %p209, %p210
      %p212 = scmp.ne.s32.totalorder %s200, %s201
      %p213 = scmp.eq.s32.totalorder %s23, 1
      %p214 = por %p212, %p213
      %p216 = scmp.ne.s32.totalorder %s201, %s215
      %p217 = scmp.eq.s32.totalorder %s23, 0
      %p218 = por %p216, %p217
      %s219 = ssub.s32 %s17, %s24
      %p220 = scmp.eq.s32.totalorder %s219, 0
      %s222 = sadd.s32 %s221, 1
      %s223 = scalar_select %p220, %s221, %s222
      %p226 = pneg %p220
      %p227 = scmp.eq.s32.totalorder %s17, 1
      %p228 = por %p226, %p227
      %p229 = scmp.ne.s32.totalorder %s221, %s224
      %p230 = scmp.eq.s32.totalorder %s17, 0
      %p231 = por %p229, %p230
      %p232 = scmp.ne.s32.totalorder %s221, %s224
      %p233 = scmp.eq.s32.totalorder %s22, 1
      %p234 = por %p232, %p233
      %p235 = scmp.ne.s32.totalorder %s224, %s225
      %p236 = scmp.eq.s32.totalorder %s22, 0
      %p237 = por %p235, %p236
      %p238 = scmp.ne.s32.totalorder %s224, %s225
      %p239 = scmp.eq.s32.totalorder %s23, 1
      %p240 = por %p238, %p239
      %p242 = scmp.ne.s32.totalorder %s225, %s241
      %p243 = scmp.eq.s32.totalorder %s23, 0
      %p244 = por %p242, %p243
      %p245 = scmp.le.s32.totalorder 1, %s17
      %p246 = scmp.lt.s32.totalorder %s17, 3
      %p247 = pnand %p245, %p246
      %p248 = pneg %p247
      // Predicated region
      $region9: #{eeg_gat_ablation_forward.1} parent=5 // pred_check
        _
      $region10: #{eeg_gat_ablation_forward.1} parent=5 // pred_check_branch
        %250 = sbr.rel (%p247) target = $region12
      $region11: #{eeg_gat_ablation_forward.1} parent=5 // pred_region
        %s251 = ssub.s32 %s17, 1
        // Predicated region
        $region13: #{eeg_gat_ablation_forward.1} parent=11 // pred_check
          %p252 = pneg %p64
        $region14: #{eeg_gat_ablation_forward.1} parent=11 // pred_check_branch
          %254 = sbr.rel (%p252) target = $region16
        $region15: #{eeg_gat_ablation_forward.1} parent=11 // pred_region
          %s256 = ssub.s32 6400, 6400
          %257 = vsyncadd [#allocation3], %s256
          %s258 = sshll.u32 [#allocation2], 4
          %s259 = int_to_ptr.vmem [resolvable:$true] %s258
          %264 = dma.hbm_to_vmem [thread:$0]  %s1, 6400, %s259, [#allocation3], 256, 256, 16
        $region16: #{eeg_gat_ablation_forward.1} parent=11 // pred_fallthru
          _
        // Predicated region
        $region17: #{eeg_gat_ablation_forward.1} parent=11 // pred_check
          %p265 = pneg %p85
        $region18: #{eeg_gat_ablation_forward.1} parent=11 // pred_check_branch
          %267 = sbr.rel (%p265) target = $region20
        $region19: #{eeg_gat_ablation_forward.1} parent=11 // pred_region
          _
        $region20: #{eeg_gat_ablation_forward.1} parent=11 // pred_fallthru
          _
        // Predicated region
        $region21: #{eeg_gat_ablation_forward.1} parent=11 // pred_check
          %p268 = pneg %p106
        $region22: #{eeg_gat_ablation_forward.1} parent=11 // pred_check_branch
          %270 = sbr.rel (%p268) target = $region24
        $region23: #{eeg_gat_ablation_forward.1} parent=11 // pred_region
          %s272 = ssub.s32 4096, 4096
          %273 = vsyncadd [#allocation5], %s272
          %s274 = sshll.u32 [#allocation4], 4
          %s275 = int_to_ptr.vmem [resolvable:$true] %s274
          %280 = dma.hbm_to_vmem [thread:$0]  %s3, 4096, %s275, [#allocation5], 64, 64, 4
        $region24: #{eeg_gat_ablation_forward.1} parent=11 // pred_fallthru
          _
        // Predicated region
        $region25: #{eeg_gat_ablation_forward.1} parent=11 // pred_check
          %p281 = pneg %p127
        $region26: #{eeg_gat_ablation_forward.1} parent=11 // pred_check_branch
          %283 = sbr.rel (%p281) target = $region28
        $region27: #{eeg_gat_ablation_forward.1} parent=11 // pred_region
          _
        $region28: #{eeg_gat_ablation_forward.1} parent=11 // pred_fallthru
          _
        // Predicated region
        $region29: #{eeg_gat_ablation_forward.1} parent=11 // pred_check
          %p284 = pneg %p148
        $region30: #{eeg_gat_ablation_forward.1} parent=11 // pred_check_branch
          %286 = sbr.rel (%p284) target = $region32
        $region31: #{eeg_gat_ablation_forward.1} parent=11 // pred_region
          _
        $region32: #{eeg_gat_ablation_forward.1} parent=11 // pred_fallthru
          _
        // Predicated region
        $region33: #{eeg_gat_ablation_forward.1} parent=11 // pred_check
          %p287 = pneg %p169
        $region34: #{eeg_gat_ablation_forward.1} parent=11 // pred_check_branch
          %289 = sbr.rel (%p287) target = $region36
        $region35: #{eeg_gat_ablation_forward.1} parent=11 // pred_region
          _
        $region36: #{eeg_gat_ablation_forward.1} parent=11 // pred_fallthru
          _
        // Predicated region
        $region37: #{eeg_gat_ablation_forward.1} parent=11 // pred_check
          %p290 = pneg %p190
        $region38: #{eeg_gat_ablation_forward.1} parent=11 // pred_check_branch
          %292 = sbr.rel (%p290) target = $region40
        $region39: #{eeg_gat_ablation_forward.1} parent=11 // pred_region
          _
        $region40: #{eeg_gat_ablation_forward.1} parent=11 // pred_fallthru
          _
        // Predicated region
        $region41: #{eeg_gat_ablation_forward.1} parent=11 // pred_check
          %p293 = pneg %p211
        $region42: #{eeg_gat_ablation_forward.1} parent=11 // pred_check_branch
          %295 = sbr.rel (%p293) target = $region44
        $region43: #{eeg_gat_ablation_forward.1} parent=11 // pred_region
          _
        $region44: #{eeg_gat_ablation_forward.1} parent=11 // pred_fallthru
          _
      $region12: #{eeg_gat_ablation_forward.1} parent=5 // pred_fallthru
        _
      %p296 = scmp.lt.s32.totalorder %s17, 2
      // Predicated region
      $region45: #{eeg_gat_ablation_forward.1} parent=5 // pred_check
        %p297 = pneg %p296
      $region46: #{eeg_gat_ablation_forward.1} parent=5 // pred_check_branch
        %299 = sbr.rel (%p297) target = $region48
      $region47: #{eeg_gat_ablation_forward.1} parent=5 // pred_region
        // Predicated region
        $region49: #{eeg_gat_ablation_forward.1} parent=47 // pred_check
          %p300 = pneg %p37
        $region50: #{eeg_gat_ablation_forward.1} parent=47 // pred_check_branch
          %302 = sbr.rel (%p300) target = $region52
        $region51: #{eeg_gat_ablation_forward.1} parent=47 // pred_region
          %p303 = scmp.lt.s32.totalorder %s17, 1
          %s304 = scalar_select %p303, %s17, 1
          %s305 = smul.addr %s304, 4
          %s306 = scalar_lea.vmem %s0, %s305
        $region52: #{eeg_gat_ablation_forward.1} parent=47 // pred_fallthru
          _
      $region48: #{eeg_gat_ablation_forward.1} parent=5 // pred_fallthru
        _
      %p307 = scmp.le.s32.totalorder 1, %s17
      %p308 = scmp.lt.s32.totalorder %s17, 3
      %p309 = pnand %p307, %p308
      %p310 = pneg %p309
      // Predicated region
      $region53: #{eeg_gat_ablation_forward.1} parent=5 // pred_check
        _
      $region54: #{eeg_gat_ablation_forward.1} parent=5 // pred_check_branch
        %312 = sbr.rel (%p309) target = $region56
      $region55: #{eeg_gat_ablation_forward.1} parent=5 // pred_region
        %s313 = ssub.s32 %s17, 1
        // Predicated region
        $region57: #{eeg_gat_ablation_forward.1} parent=55 // pred_check
          %p314 = pneg %p64
        $region58: #{eeg_gat_ablation_forward.1} parent=55 // pred_check_branch
          %316 = sbr.rel (%p314) target = $region60
        $region59: #{eeg_gat_ablation_forward.1} parent=55 // pred_region
          %317 = dma.done [#allocation3], 6400
        $region60: #{eeg_gat_ablation_forward.1} parent=55 // pred_fallthru
          _
        // Predicated region
        $region61: #{eeg_gat_ablation_forward.1} parent=55 // pred_check
          %p318 = pneg %p106
        $region62: #{eeg_gat_ablation_forward.1} parent=55 // pred_check_branch
          %320 = sbr.rel (%p318) target = $region64
        $region63: #{eeg_gat_ablation_forward.1} parent=55 // pred_region
          %321 = dma.done [#allocation5], 4096
        $region64: #{eeg_gat_ablation_forward.1} parent=55 // pred_fallthru
          _
        %p322 = scmp.lt.s32.totalorder %s22, 1
        %s323 = scalar_select %p322, %s22, 1
        %s324 = smul.addr %s323, 4
        %s325 = scalar_lea.vmem %s0, %s324
        %p326 = pneg %p43
        %p327 = pneg %p40
        %p328 = pneg %p64
        %p329 = pneg %p61
        %p330 = pneg %p85
        %p331 = pneg %p82
        %p332 = pneg %p106
        %p333 = pneg %p103
        %p334 = pneg %p127
        %p335 = pneg %p124
        %p336 = pneg %p148
        %p337 = pneg %p145
        %p338 = pneg %p169
        %p339 = pneg %p166
        %p340 = pneg %p190
        %p341 = pneg %p187
        %p342 = pneg %p211
        %p343 = pneg %p208
        %p344 = pneg %p237
        %p345 = pneg %p234
        %p346 = scmp.lt.s32.totalorder %s22, 1
        %s347 = scalar_select %p346, %s22, 1
        %s348 = smul.addr %s347, 8
        %s349 = scalar_lea.vmem %s9, %s348
        %p350 = scmp.lt.s32.totalorder %s22, 1
        %s351 = scalar_select %p350, %s22, 1
        %s352 = smul.addr %s351, 4
        %s353 = scalar_lea.vmem %s0, %s352
        %p354 = scmp.lt.s32.totalorder %s22, 1
        %s355 = scalar_select %p354, %s22, 1
        %s356 = smul.addr %s355, 8
        %s357 = scalar_lea.vmem %s9, %s356
        %v359 = vld [vmem:[%s353] sm:$0xf]
        %v360 = vld [vmem:[#allocation2] sm:$0xff]
        %v361 = vld [vmem:[#allocation2 + $0x8] sm:$0xff]
        %v362 = vld [vmem:[#allocation2 + $0x10] sm:$0xff]
        %v363 = vld [vmem:[#allocation2 + $0x18] sm:$0xff]
        %v364 = vld [vmem:[#allocation2 + $0x20] sm:$0xff]
        %v365 = vld [vmem:[#allocation2 + $0x28] sm:$0xff]
        %v366 = vld [vmem:[#allocation2 + $0x30] sm:$0xff]
        %v367 = vld [vmem:[#allocation2 + $0x38] sm:$0xff]
        %v368 = vld [vmem:[#allocation2 + $0x40] sm:$0xff]
        %v369 = vld [vmem:[#allocation2 + $0x48] sm:$0xff]
        %v380 = vunpack.c.l.b16 %v360
        %v381 = vunpack.c.h.b16 %v360
        %v382 = vunpack.c.l.b16 %v361
        %v383 = vunpack.c.h.b16 %v361
        %v384 = vunpack.c.l.b16 %v362
        %v385 = vunpack.c.h.b16 %v362
        %v386 = vunpack.c.l.b16 %v363
        %v387 = vunpack.c.h.b16 %v363
        %v388 = vunpack.c.l.b16 %v364
        %v389 = vunpack.c.h.b16 %v364
        %v390 = vunpack.c.l.b16 %v365
        %v391 = vunpack.c.h.b16 %v365
        %v392 = vunpack.c.l.b16 %v366
        %v393 = vunpack.c.h.b16 %v366
        %v394 = vunpack.c.l.b16 %v367
        %v395 = vunpack.c.h.b16 %v367
        %v396 = vunpack.c.l.b16 %v368
        %v397 = vunpack.c.h.b16 %v368
        %v398 = vunpack.c.l.b16 %v369
        %v399 = vunpack.c.h.b16 %v369
        %v400 = vpack.c.b16 %v384, %v380
        %v401 = vpack.c.b16 %v385, %v381
        %v402 = vpack.c.b16 %v386, %v382
        %v403 = vpack.c.b16 %v387, %v383
        %v404 = vpack.c.b16 %v392, %v388
        %v405 = vpack.c.b16 %v393, %v389
        %v406 = vpack.c.b16 %v394, %v390
        %v407 = vpack.c.b16 %v395, %v391
        %v408 = vpack.c.b16 %v396, %v396
        %v409 = vpack.c.b16 %v397, %v397
        %v410 = vpack.c.b16 %v398, %v398
        %v411 = vpack.c.b16 %v399, %v399
        %vm420 = vcmask 326656
        %v422 = vsel %vm420, %v359, 0
        %vm424 = vcmask 1043456
        %v426 = vsel %vm424, %v408, 0
        %v429 = vsel %vm424, %v409, 0
        %v432 = vsel %vm424, %v410, 0
        %v435 = vsel %vm424, %v411, 0
        %437 = vmatprep.subr.bf16.mxu0 %v401
        %438 = vmatpush1.bf16.msra.mxu0 %v400
        %439 = vmatprep.subr.bf16.mxu0 %v405
        %440 = vmatpush1.bf16.msra.mxu0 %v404
        %441 = vmatprep.subr.bf16.mxu0 %v429
        %442 = vmatpush1.bf16.msra.mxu0 %v426
        %443 = vmatprep.subr.bf16.mxu0 0
        %444 = vmatpush1.bf16.msra.mxu0 0
        %445 = vmatprep.subr.bf16.mxu0 0
        %446 = vmatpush1.bf16.msra.mxu0 0
        %447 = vmatprep.subr.bf16.mxu0 0
        %448 = vmatpush1.bf16.msra.mxu0 0
        %449 = vmatprep.subr.bf16.mxu0 0
        %450 = vmatpush1.bf16.msra.mxu0 0
        %451 = vmatprep.subr.bf16.mxu0 0
        %452 = vmatpush1.bf16.msra.mxu0 0
        %453 = vmatprep.subr.bf16.mxu0 0
        %454 = vmatpush1.bf16.msra.mxu0 0
        %455 = vmatprep.subr.bf16.mxu0 0
        %456 = vmatpush1.bf16.msra.mxu0 0
        %457 = vmatprep.subr.bf16.mxu0 0
        %458 = vmatpush1.bf16.msra.mxu0 0
        %459 = vmatprep.subr.bf16.mxu0 0
        %460 = vmatpush1.bf16.msra.mxu0 0
        %461 = vmatprep.subr.bf16.mxu0 0
        %462 = vmatpush1.bf16.msra.mxu0 0
        %463 = vmatprep.subr.bf16.mxu0 0
        %464 = vmatpush1.bf16.msra.mxu0 0
        %465 = vmatprep.subr.bf16.mxu0 0
        %466 = vmatpush1.bf16.msra.mxu0 0
        %467 = vmatprep.subr.bf16.mxu0 0
        %468 = vmatpush1.bf16.msra.mxu0 0
        %469 = vmatprep.mubr.bf16.mxu0 0
        %470 = vmatmul.mubr.bf16.gmra.mrb[0].mxu0 %v422
        %v471 = vpop.f32.mrb[0].mxu0
        %v472 = vadd.f32 0.0, %v471
        %v473 = vpop.f32.mrb[0].mxu0
        %v474 = vadd.f32 0.0, %v473
        %v475 = vpop.f32.mrb[0].mxu0
        %v476 = vpop.f32.mrb[0].mxu0
        %477 = vdwg.mxu0
        %478 = vmatprep.subr.bf16.mxu0 %v403
        %479 = vmatpush1.bf16.msra.mxu0 %v402
        %480 = vmatprep.subr.bf16.mxu0 %v407
        %481 = vmatpush1.bf16.msra.mxu0 %v406
        %482 = vmatprep.subr.bf16.mxu0 %v435
        %483 = vmatpush1.bf16.msra.mxu0 %v432
        %484 = vmatprep.subr.bf16.mxu0 0
        %485 = vmatpush1.bf16.msra.mxu0 0
        %486 = vmatprep.subr.bf16.mxu0 0
        %487 = vmatpush1.bf16.msra.mxu0 0
        %488 = vmatprep.subr.bf16.mxu0 0
        %489 = vmatpush1.bf16.msra.mxu0 0
        %490 = vmatprep.subr.bf16.mxu0 0
        %491 = vmatpush1.bf16.msra.mxu0 0
        %492 = vmatprep.subr.bf16.mxu0 0
        %493 = vmatpush1.bf16.msra.mxu0 0
        %494 = vmatprep.subr.bf16.mxu0 0
        %495 = vmatpush1.bf16.msra.mxu0 0
        %496 = vmatprep.subr.bf16.mxu0 0
        %497 = vmatpush1.bf16.msra.mxu0 0
        %498 = vmatprep.subr.bf16.mxu0 0
        %499 = vmatpush1.bf16.msra.mxu0 0
        %500 = vmatprep.subr.bf16.mxu0 0
        %501 = vmatpush1.bf16.msra.mxu0 0
        %502 = vmatprep.subr.bf16.mxu0 0
        %503 = vmatpush1.bf16.msra.mxu0 0
        %504 = vmatprep.subr.bf16.mxu0 0
        %505 = vmatpush1.bf16.msra.mxu0 0
        %506 = vmatprep.subr.bf16.mxu0 0
        %507 = vmatpush1.bf16.msra.mxu0 0
        %508 = vmatprep.subr.bf16.mxu0 0
        %509 = vmatpush1.bf16.msra.mxu0 0
        %510 = vmatprep.mubr.bf16.mxu0 0
        %511 = vmatmul.mubr.bf16.gmra.mrb[0].mxu0 %v422
        %v512 = vpop.f32.mrb[0].mxu0
        %v513 = vadd.f32 0.0, %v512
        %v514 = vpop.f32.mrb[0].mxu0
        %v515 = vadd.f32 0.0, %v514
        %v516 = vpop.f32.mrb[0].mxu0
        %v517 = vpop.f32.mrb[0].mxu0
        %518 = vdwg.mxu0
        %s519 = scalar_lea.vmem [#allocation2], 80
        %v520 = vld [vmem:[%s519] sm:$0xff]
        %v521 = vld [vmem:[%s519 + $0x8] sm:$0xff]
        %v522 = vld [vmem:[%s519 + $0x10] sm:$0xff]
        %v523 = vld [vmem:[%s519 + $0x18] sm:$0xff]
        %v524 = vld [vmem:[%s519 + $0x20] sm:$0xff]
        %v525 = vld [vmem:[%s519 + $0x28] sm:$0xff]
        %v526 = vld [vmem:[%s519 + $0x30] sm:$0xff]
        %v527 = vld [vmem:[%s519 + $0x38] sm:$0xff]
        %v528 = vld [vmem:[%s519 + $0x40] sm:$0xff]
        %v529 = vld [vmem:[%s519 + $0x48] sm:$0xff]
        %v540 = vunpack.c.l.b16 %v520
        %v541 = vunpack.c.h.b16 %v520
        %v542 = vunpack.c.l.b16 %v521
        %v543 = vunpack.c.h.b16 %v521
        %v544 = vunpack.c.l.b16 %v522
        %v545 = vunpack.c.h.b16 %v522
        %v546 = vunpack.c.l.b16 %v523
        %v547 = vunpack.c.h.b16 %v523
        %v548 = vunpack.c.l.b16 %v524
        %v549 = vunpack.c.h.b16 %v524
        %v550 = vunpack.c.l.b16 %v525
        %v551 = vunpack.c.h.b16 %v525
        %v552 = vunpack.c.l.b16 %v526
        %v553 = vunpack.c.h.b16 %v526
        %v554 = vunpack.c.l.b16 %v527
        %v555 = vunpack.c.h.b16 %v527
        %v556 = vunpack.c.l.b16 %v528
        %v557 = vunpack.c.h.b16 %v528
        %v558 = vunpack.c.l.b16 %v529
        %v559 = vunpack.c.h.b16 %v529
        %v560 = vpack.c.b16 %v544, %v540
        %v561 = vpack.c.b16 %v545, %v541
        %v562 = vpack.c.b16 %v546, %v542
        %v563 = vpack.c.b16 %v547, %v543
        %v564 = vpack.c.b16 %v552, %v548
        %v565 = vpack.c.b16 %v553, %v549
        %v566 = vpack.c.b16 %v554, %v550
        %v567 = vpack.c.b16 %v555, %v551
        %v568 = vpack.c.b16 %v556, %v556
        %v569 = vpack.c.b16 %v557, %v557
        %v570 = vpack.c.b16 %v558, %v558
        %v571 = vpack.c.b16 %v559, %v559
        %v581 = vsel %vm424, %v568, 0
        %v584 = vsel %vm424, %v569, 0
        %v587 = vsel %vm424, %v570, 0
        %v590 = vsel %vm424, %v571, 0
        %592 = vmatprep.subr.bf16.mxu0 %v561
        %593 = vmatpush1.bf16.msra.mxu0 %v560
        %594 = vmatprep.subr.bf16.mxu0 %v565
        %595 = vmatpush1.bf16.msra.mxu0 %v564
        %596 = vmatprep.subr.bf16.mxu0 %v584
        %597 = vmatpush1.bf16.msra.mxu0 %v581
        %598 = vmatprep.subr.bf16.mxu0 0
        %599 = vmatpush1.bf16.msra.mxu0 0
        %600 = vmatprep.subr.bf16.mxu0 0
        %601 = vmatpush1.bf16.msra.mxu0 0
        %602 = vmatprep.subr.bf16.mxu0 0
        %603 = vmatpush1.bf16.msra.mxu0 0
        %604 = vmatprep.subr.bf16.mxu0 0
        %605 = vmatpush1.bf16.msra.mxu0 0
        %606 = vmatprep.subr.bf16.mxu0 0
        %607 = vmatpush1.bf16.msra.mxu0 0
        %608 = vmatprep.subr.bf16.mxu0 0
        %609 = vmatpush1.bf16.msra.mxu0 0
        %610 = vmatprep.subr.bf16.mxu0 0
        %611 = vmatpush1.bf16.msra.mxu0 0
        %612 = vmatprep.subr.bf16.mxu0 0
        %613 = vmatpush1.bf16.msra.mxu0 0
        %614 = vmatprep.subr.bf16.mxu0 0
        %615 = vmatpush1.bf16.msra.mxu0 0
        %616 = vmatprep.subr.bf16.mxu0 0
        %617 = vmatpush1.bf16.msra.mxu0 0
        %618 = vmatprep.subr.bf16.mxu0 0
        %619 = vmatpush1.bf16.msra.mxu0 0
        %620 = vmatprep.subr.bf16.mxu0 0
        %621 = vmatpush1.bf16.msra.mxu0 0
        %622 = vmatprep.subr.bf16.mxu0 0
        %623 = vmatpush1.bf16.msra.mxu0 0
        %624 = vmatprep.mubr.bf16.mxu0 0
        %625 = vmatmul.mubr.bf16.gmra.mrb[0].mxu0 %v422
        %v626 = vpop.f32.mrb[0].mxu0
        %v627 = vadd.f32 0.0, %v626
        %v628 = vpop.f32.mrb[0].mxu0
        %v629 = vadd.f32 0.0, %v628
        %v630 = vpop.f32.mrb[0].mxu0
        %v631 = vpop.f32.mrb[0].mxu0
        %632 = vdwg.mxu0
        %633 = vmatprep.subr.bf16.mxu0 %v563
        %634 = vmatpush1.bf16.msra.mxu0 %v562
        %635 = vmatprep.subr.bf16.mxu0 %v567
        %636 = vmatpush1.bf16.msra.mxu0 %v566
        %637 = vmatprep.subr.bf16.mxu0 %v590
        %638 = vmatpush1.bf16.msra.mxu0 %v587
        %639 = vmatprep.subr.bf16.mxu0 0
        %640 = vmatpush1.bf16.msra.mxu0 0
        %641 = vmatprep.subr.bf16.mxu0 0
        %642 = vmatpush1.bf16.msra.mxu0 0
        %643 = vmatprep.subr.bf16.mxu0 0
        %644 = vmatpush1.bf16.msra.mxu0 0
        %645 = vmatprep.subr.bf16.mxu0 0
        %646 = vmatpush1.bf16.msra.mxu0 0
        %647 = vmatprep.subr.bf16.mxu0 0
        %648 = vmatpush1.bf16.msra.mxu0 0
        %649 = vmatprep.subr.bf16.mxu0 0
        %650 = vmatpush1.bf16.msra.mxu0 0
        %651 = vmatprep.subr.bf16.mxu0 0
        %652 = vmatpush1.bf16.msra.mxu0 0
        %653 = vmatprep.subr.bf16.mxu0 0
        %654 = vmatpush1.bf16.msra.mxu0 0
        %655 = vmatprep.subr.bf16.mxu0 0
        %656 = vmatpush1.bf16.msra.mxu0 0
        %657 = vmatprep.subr.bf16.mxu0 0
        %658 = vmatpush1.bf16.msra.mxu0 0
        %659 = vmatprep.subr.bf16.mxu0 0
        %660 = vmatpush1.bf16.msra.mxu0 0
        %661 = vmatprep.subr.bf16.mxu0 0
        %662 = vmatpush1.bf16.msra.mxu0 0
        %663 = vmatprep.subr.bf16.mxu0 0
        %664 = vmatpush1.bf16.msra.mxu0 0
        %665 = vmatprep.mubr.bf16.mxu0 0
        %666 = vmatmul.mubr.bf16.gmra.mrb[0].mxu0 %v422
        %v667 = vpop.f32.mrb[0].mxu0
        %v668 = vadd.f32 0.0, %v667
        %v669 = vpop.f32.mrb[0].mxu0
        %v670 = vadd.f32 0.0, %v669
        %v671 = vpop.f32.mrb[0].mxu0
        %v672 = vpop.f32.mrb[0].mxu0
        %673 = vdwg.mxu0
        %v674 = vmax.f32 %v472, %v627
        %v675 = vmax.f32 %v474, %v629
        %v676 = vmax.f32 %v513, %v668
        %v677 = vmax.f32 %v515, %v670
        %s678 = scalar_lea.vmem [#allocation2], 160
        %v679 = vld [vmem:[%s678] sm:$0xff]
        %v680 = vld [vmem:[%s678 + $0x8] sm:$0xff]
        %v681 = vld [vmem:[%s678 + $0x10] sm:$0xff]
        %v682 = vld [vmem:[%s678 + $0x18] sm:$0xff]
        %v683 = vld [vmem:[%s678 + $0x20] sm:$0xff]
        %v684 = vld [vmem:[%s678 + $0x28] sm:$0xff]
        %v685 = vld [vmem:[%s678 + $0x30] sm:$0xff]
        %v686 = vld [vmem:[%s678 + $0x38] sm:$0xff]
        %v687 = vld [vmem:[%s678 + $0x40] sm:$0xff]
        %v688 = vld [vmem:[%s678 + $0x48] sm:$0xff]
        %v699 = vunpack.c.l.b16 %v679
        %v700 = vunpack.c.h.b16 %v679
        %v701 = vunpack.c.l.b16 %v680
        %v702 = vunpack.c.h.b16 %v680
        %v703 = vunpack.c.l.b16 %v681
        %v704 = vunpack.c.h.b16 %v681
        %v705 = vunpack.c.l.b16 %v682
        %v706 = vunpack.c.h.b16 %v682
        %v707 = vunpack.c.l.b16 %v683
        %v708 = vunpack.c.h.b16 %v683
        %v709 = vunpack.c.l.b16 %v684
        %v710 = vunpack.c.h.b16 %v684
        %v711 = vunpack.c.l.b16 %v685
        %v712 = vunpack.c.h.b16 %v685
        %v713 = vunpack.c.l.b16 %v686
        %v714 = vunpack.c.h.b16 %v686
        %v715 = vunpack.c.l.b16 %v687
        %v716 = vunpack.c.h.b16 %v687
        %v717 = vunpack.c.l.b16 %v688
        %v718 = vunpack.c.h.b16 %v688
        %v719 = vpack.c.b16 %v703, %v699
        %v720 = vpack.c.b16 %v704, %v700
        %v721 = vpack.c.b16 %v705, %v701
        %v722 = vpack.c.b16 %v706, %v702
        %v723 = vpack.c.b16 %v711, %v707
        %v724 = vpack.c.b16 %v712, %v708
        %v725 = vpack.c.b16 %v713, %v709
        %v726 = vpack.c.b16 %v714, %v710
        %v727 = vpack.c.b16 %v715, %v715
        %v728 = vpack.c.b16 %v716, %v716
        %v729 = vpack.c.b16 %v717, %v717
        %v730 = vpack.c.b16 %v718, %v718
        %v740 = vsel %vm424, %v727, 0
        %v743 = vsel %vm424, %v728, 0
        %v746 = vsel %vm424, %v729, 0
        %v749 = vsel %vm424, %v730, 0
        %751 = vmatprep.subr.bf16.mxu0 %v720
        %752 = vmatpush1.bf16.msra.mxu0 %v719
        %753 = vmatprep.subr.bf16.mxu0 %v724
        %754 = vmatpush1.bf16.msra.mxu0 %v723
        %755 = vmatprep.subr.bf16.mxu0 %v743
        %756 = vmatpush1.bf16.msra.mxu0 %v740
        %757 = vmatprep.subr.bf16.mxu0 0
        %758 = vmatpush1.bf16.msra.mxu0 0
        %759 = vmatprep.subr.bf16.mxu0 0
        %760 = vmatpush1.bf16.msra.mxu0 0
        %761 = vmatprep.subr.bf16.mxu0 0
        %762 = vmatpush1.bf16.msra.mxu0 0
        %763 = vmatprep.subr.bf16.mxu0 0
        %764 = vmatpush1.bf16.msra.mxu0 0
        %765 = vmatprep.subr.bf16.mxu0 0
        %766 = vmatpush1.bf16.msra.mxu0 0
        %767 = vmatprep.subr.bf16.mxu0 0
        %768 = vmatpush1.bf16.msra.mxu0 0
        %769 = vmatprep.subr.bf16.mxu0 0
        %770 = vmatpush1.bf16.msra.mxu0 0
        %771 = vmatprep.subr.bf16.mxu0 0
        %772 = vmatpush1.bf16.msra.mxu0 0
        %773 = vmatprep.subr.bf16.mxu0 0
        %774 = vmatpush1.bf16.msra.mxu0 0
        %775 = vmatprep.subr.bf16.mxu0 0
        %776 = vmatpush1.bf16.msra.mxu0 0
        %777 = vmatprep.subr.bf16.mxu0 0
        %778 = vmatpush1.bf16.msra.mxu0 0
        %779 = vmatprep.subr.bf16.mxu0 0
        %780 = vmatpush1.bf16.msra.mxu0 0
        %781 = vmatprep.subr.bf16.mxu0 0
        %782 = vmatpush1.bf16.msra.mxu0 0
        %783 = vmatprep.mubr.bf16.mxu0 0
        %784 = vmatmul.mubr.bf16.gmra.mrb[0].mxu0 %v422
        %v785 = vpop.f32.mrb[0].mxu0
        %v786 = vadd.f32 0.0, %v785
        %v787 = vpop.f32.mrb[0].mxu0
        %v788 = vadd.f32 0.0, %v787
        %v789 = vpop.f32.mrb[0].mxu0
        %v790 = vpop.f32.mrb[0].mxu0
        %791 = vdwg.mxu0
        %792 = vmatprep.subr.bf16.mxu0 %v722
        %793 = vmatpush1.bf16.msra.mxu0 %v721
        %794 = vmatprep.subr.bf16.mxu0 %v726
        %795 = vmatpush1.bf16.msra.mxu0 %v725
        %796 = vmatprep.subr.bf16.mxu0 %v749
        %797 = vmatpush1.bf16.msra.mxu0 %v746
        %798 = vmatprep.subr.bf16.mxu0 0
        %799 = vmatpush1.bf16.msra.mxu0 0
        %800 = vmatprep.subr.bf16.mxu0 0
        %801 = vmatpush1.bf16.msra.mxu0 0
        %802 = vmatprep.subr.bf16.mxu0 0
        %803 = vmatpush1.bf16.msra.mxu0 0
        %804 = vmatprep.subr.bf16.mxu0 0
        %805 = vmatpush1.bf16.msra.mxu0 0
        %806 = vmatprep.subr.bf16.mxu0 0
        %807 = vmatpush1.bf16.msra.mxu0 0
        %808 = vmatprep.subr.bf16.mxu0 0
        %809 = vmatpush1.bf16.msra.mxu0 0
        %810 = vmatprep.subr.bf16.mxu0 0
        %811 = vmatpush1.bf16.msra.mxu0 0
        %812 = vmatprep.subr.bf16.mxu0 0
        %813 = vmatpush1.bf16.msra.mxu0 0
        %814 = vmatprep.subr.bf16.mxu0 0
        %815 = vmatpush1.bf16.msra.mxu0 0
        %816 = vmatprep.subr.bf16.mxu0 0
        %817 = vmatpush1.bf16.msra.mxu0 0
        %818 = vmatprep.subr.bf16.mxu0 0
        %819 = vmatpush1.bf16.msra.mxu0 0
        %820 = vmatprep.subr.bf16.mxu0 0
        %821 = vmatpush1.bf16.msra.mxu0 0
        %822 = vmatprep.subr.bf16.mxu0 0
        %823 = vmatpush1.bf16.msra.mxu0 0
        %824 = vmatprep.mubr.bf16.mxu0 0
        %825 = vmatmul.mubr.bf16.gmra.mrb[0].mxu0 %v422
        %v826 = vpop.f32.mrb[0].mxu0
        %v827 = vadd.f32 0.0, %v826
        %v828 = vpop.f32.mrb[0].mxu0
        %v829 = vadd.f32 0.0, %v828
        %v830 = vpop.f32.mrb[0].mxu0
        %v831 = vpop.f32.mrb[0].mxu0
        %832 = vdwg.mxu0
        %v833 = vmax.f32 %v674, %v786
        %v834 = vmax.f32 %v675, %v788
        %v835 = vmax.f32 %v676, %v827
        %v836 = vmax.f32 %v677, %v829
        %s837 = scalar_lea.vmem [#allocation2], 240
        %v838 = vld [vmem:[%s837] sm:$0xff]
        %v839 = vld [vmem:[%s837 + $0x8] sm:$0xff]
        %v840 = vld [vmem:[%s837 + $0x10] sm:$0xff]
        %v841 = vld [vmem:[%s837 + $0x18] sm:$0xff]
        %v842 = vld [vmem:[%s837 + $0x20] sm:$0xff]
        %v843 = vld [vmem:[%s837 + $0x28] sm:$0xff]
        %v844 = vld [vmem:[%s837 + $0x30] sm:$0xff]
        %v845 = vld [vmem:[%s837 + $0x38] sm:$0xff]
        %v846 = vld [vmem:[%s837 + $0x40] sm:$0xff]
        %v847 = vld [vmem:[%s837 + $0x48] sm:$0xff]
        %v858 = vunpack.c.l.b16 %v838
        %v859 = vunpack.c.h.b16 %v838
        %v860 = vunpack.c.l.b16 %v839
        %v861 = vunpack.c.h.b16 %v839
        %v862 = vunpack.c.l.b16 %v840
        %v863 = vunpack.c.h.b16 %v840
        %v864 = vunpack.c.l.b16 %v841
        %v865 = vunpack.c.h.b16 %v841
        %v866 = vunpack.c.l.b16 %v842
        %v867 = vunpack.c.h.b16 %v842
        %v868 = vunpack.c.l.b16 %v843
        %v869 = vunpack.c.h.b16 %v843
        %v870 = vunpack.c.l.b16 %v844
        %v871 = vunpack.c.h.b16 %v844
        %v872 = vunpack.c.l.b16 %v845
        %v873 = vunpack.c.h.b16 %v845
        %v874 = vunpack.c.l.b16 %v846
        %v875 = vunpack.c.h.b16 %v846
        %v876 = vunpack.c.l.b16 %v847
        %v877 = vunpack.c.h.b16 %v847
        %v878 = vpack.c.b16 %v862, %v858
        %v879 = vpack.c.b16 %v863, %v859
        %v880 = vpack.c.b16 %v864, %v860
        %v881 = vpack.c.b16 %v865, %v861
        %v882 = vpack.c.b16 %v870, %v866
        %v883 = vpack.c.b16 %v871, %v867
        %v884 = vpack.c.b16 %v872, %v868
        %v885 = vpack.c.b16 %v873, %v869
        %v886 = vpack.c.b16 %v874, %v874
        %v887 = vpack.c.b16 %v875, %v875
        %v888 = vpack.c.b16 %v876, %v876
        %v889 = vpack.c.b16 %v877, %v877
        %v899 = vsel %vm424, %v886, 0
        %v902 = vsel %vm424, %v887, 0
        %v905 = vsel %vm424, %v888, 0
        %v908 = vsel %vm424, %v889, 0
        %910 = vmatprep.subr.bf16.mxu0 %v879
        %911 = vmatpush1.bf16.msra.mxu0 %v878
        %912 = vmatprep.subr.bf16.mxu0 %v883
        %913 = vmatpush1.bf16.msra.mxu0 %v882
        %914 = vmatprep.subr.bf16.mxu0 %v902
        %915 = vmatpush1.bf16.msra.mxu0 %v899
        %916 = vmatprep.subr.bf16.mxu0 0
        %917 = vmatpush1.bf16.msra.mxu0 0
        %918 = vmatprep.subr.bf16.mxu0 0
        %919 = vmatpush1.bf16.msra.mxu0 0
        %920 = vmatprep.subr.bf16.mxu0 0
        %921 = vmatpush1.bf16.msra.mxu0 0
        %922 = vmatprep.subr.bf16.mxu0 0
        %923 = vmatpush1.bf16.msra.mxu0 0
        %924 = vmatprep.subr.bf16.mxu0 0
        %925 = vmatpush1.bf16.msra.mxu0 0
        %926 = vmatprep.subr.bf16.mxu0 0
        %927 = vmatpush1.bf16.msra.mxu0 0
        %928 = vmatprep.subr.bf16.mxu0 0
        %929 = vmatpush1.bf16.msra.mxu0 0
        %930 = vmatprep.subr.bf16.mxu0 0
        %931 = vmatpush1.bf16.msra.mxu0 0
        %932 = vmatprep.subr.bf16.mxu0 0
        %933 = vmatpush1.bf16.msra.mxu0 0
        %934 = vmatprep.subr.bf16.mxu0 0
        %935 = vmatpush1.bf16.msra.mxu0 0
        %936 = vmatprep.subr.bf16.mxu0 0
        %937 = vmatpush1.bf16.msra.mxu0 0
        %938 = vmatprep.subr.bf16.mxu0 0
        %939 = vmatpush1.bf16.msra.mxu0 0
        %940 = vmatprep.subr.bf16.mxu0 0
        %941 = vmatpush1.bf16.msra.mxu0 0
        %942 = vmatprep.mubr.bf16.mxu0 0
        %943 = vmatmul.mubr.bf16.gmra.mrb[0].mxu0 %v422
        %v944 = vpop.f32.mrb[0].mxu0
        %v945 = vadd.f32 0.0, %v944
        %v946 = vpop.f32.mrb[0].mxu0
        %v947 = vadd.f32 0.0, %v946
        %v948 = vpop.f32.mrb[0].mxu0
        %v949 = vpop.f32.mrb[0].mxu0
        %950 = vdwg.mxu0
        %951 = vmatprep.subr.bf16.mxu0 %v881
        %952 = vmatpush1.bf16.msra.mxu0 %v880
        %953 = vmatprep.subr.bf16.mxu0 %v885
        %954 = vmatpush1.bf16.msra.mxu0 %v884
        %955 = vmatprep.subr.bf16.mxu0 %v908
        %956 = vmatpush1.bf16.msra.mxu0 %v905
        %957 = vmatprep.subr.bf16.mxu0 0
        %958 = vmatpush1.bf16.msra.mxu0 0
        %959 = vmatprep.subr.bf16.mxu0 0
        %960 = vmatpush1.bf16.msra.mxu0 0
        %961 = vmatprep.subr.bf16.mxu0 0
        %962 = vmatpush1.bf16.msra.mxu0 0
        %963 = vmatprep.subr.bf16.mxu0 0
        %964 = vmatpush1.bf16.msra.mxu0 0
        %965 = vmatprep.subr.bf16.mxu0 0
        %966 = vmatpush1.bf16.msra.mxu0 0
        %967 = vmatprep.subr.bf16.mxu0 0
        %968 = vmatpush1.bf16.msra.mxu0 0
        %969 = vmatprep.subr.bf16.mxu0 0
        %970 = vmatpush1.bf16.msra.mxu0 0
        %971 = vmatprep.subr.bf16.mxu0 0
        %972 = vmatpush1.bf16.msra.mxu0 0
        %973 = vmatprep.subr.bf16.mxu0 0
        %974 = vmatpush1.bf16.msra.mxu0 0
        %975 = vmatprep.subr.bf16.mxu0 0
        %976 = vmatpush1.bf16.msra.mxu0 0
        %977 = vmatprep.subr.bf16.mxu0 0
        %978 = vmatpush1.bf16.msra.mxu0 0
        %979 = vmatprep.subr.bf16.mxu0 0
        %980 = vmatpush1.bf16.msra.mxu0 0
        %981 = vmatprep.subr.bf16.mxu0 0
        %982 = vmatpush1.bf16.msra.mxu0 0
        %983 = vmatprep.mubr.bf16.mxu0 0
        %984 = vmatmul.mubr.bf16.gmra.mrb[0].mxu0 %v422
        %v985 = vpop.f32.mrb[0].mxu0
        %v986 = vadd.f32 0.0, %v985
        %v987 = vpop.f32.mrb[0].mxu0
        %v988 = vadd.f32 0.0, %v987
        %v989 = vpop.f32.mrb[0].mxu0
        %v990 = vpop.f32.mrb[0].mxu0
        %991 = vdwg.mxu0
        %v992 = vmax.f32 %v833, %v945
        %v993 = vmax.f32 %v834, %v947
        %v994 = vmax.f32 %v835, %v986
        %v995 = vmax.f32 %v836, %v988
        %s996 = scalar_lea.vmem [#allocation2], 320
        %v997 = vld [vmem:[%s996] sm:$0xff]
        %v998 = vld [vmem:[%s996 + $0x8] sm:$0xff]
        %v999 = vld [vmem:[%s996 + $0x10] sm:$0xff]
        %v1000 = vld [vmem:[%s996 + $0x18] sm:$0xff]
        %v1001 = vld [vmem:[%s996 + $0x20] sm:$0xff]
        %v1002 = vld [vmem:[%s996 + $0x28] sm:$0xff]
        %v1003 = vld [vmem:[%s996 + $0x30] sm:$0xff]
        %v1004 = vld [vmem:[%s996 + $0x38] sm:$0xff]
        %v1005 = vld [vmem:[%s996 + $0x40] sm:$0xff]
        %v1006 = vld [vmem:[%s996 + $0x48] sm:$0xff]
        %v1017 = vunpack.c.l.b16 %v997
        %v1018 = vunpack.c.h.b16 %v997
        %v1019 = vunpack.c.l.b16 %v998
        %v1020 = vunpack.c.h.b16 %v998
        %v1021 = vunpack.c.l.b16 %v999
        %v1022 = vunpack.c.h.b16 %v999
        %v1023 = vunpack.c.l.b16 %v1000
        %v1024 = vunpack.c.h.b16 %v1000
        %v1025 = vunpack.c.l.b16 %v1001
        %v1026 = vunpack.c.h.b16 %v1001
        %v1027 = vunpack.c.l.b16 %v1002
        %v1028 = vunpack.c.h.b16 %v1002
        %v1029 = vunpack.c.l.b16 %v1003
        %v1030 = vunpack.c.h.b16 %v1003
        %v1031 = vunpack.c.l.b16 %v1004
        %v1032 = vunpack.c.h.b16 %v1004
        %v1033 = vunpack.c.l.b16 %v1005
        %v1034 = vunpack.c.h.b16 %v1005
        %v1035 = vunpack.c.l.b16 %v1006
        %v1036 = vunpack.c.h.b16 %v1006
        %v1037 = vpack.c.b16 %v1021, %v1017
        %v1038 = vpack.c.b16 %v1022, %v1018
        %v1039 = vpack.c.b16 %v1023, %v1019
        %v1040 = vpack.c.b16 %v1024, %v1020
        %v1041 = vpack.c.b16 %v1029, %v1025
        %v1042 = vpack.c.b16 %v1030, %v1026
        %v1043 = vpack.c.b16 %v1031, %v1027
        %v1044 = vpack.c.b16 %v1032, %v1028
        %v1045 = vpack.c.b16 %v1033, %v1033
        %v1046 = vpack.c.b16 %v1034, %v1034
        %v1047 = vpack.c.b16 %v1035, %v1035
        %v1048 = vpack.c.b16 %v1036, %v1036
        %v1058 = vsel %vm424, %v1045, 0
        %v1061 = vsel %vm424, %v1046, 0
        %v1064 = vsel %vm424, %v1047, 0
        %v1067 = vsel %vm424, %v1048, 0
        %1069 = vmatprep.subr.bf16.mxu0 %v1038
        %1070 = vmatpush1.bf16.msra.mxu0 %v1037
        %1071 = vmatprep.subr.bf16.mxu0 %v1042
        %1072 = vmatpush1.bf16.msra.mxu0 %v1041
        %1073 = vmatprep.subr.bf16.mxu0 %v1061
        %1074 = vmatpush1.bf16.msra.mxu0 %v1058
        %1075 = vmatprep.subr.bf16.mxu0 0
        %1076 = vmatpush1.bf16.msra.mxu0 0
        %1077 = vmatprep.subr.bf16.mxu0 0
        %1078 = vmatpush1.bf16.msra.mxu0 0
        %1079 = vmatprep.subr.bf16.mxu0 0
        %1080 = vmatpush1.bf16.msra.mxu0 0
        %1081 = vmatprep.subr.bf16.mxu0 0
        %1082 = vmatpush1.bf16.msra.mxu0 0
        %1083 = vmatprep.subr.bf16.mxu0 0
        %1084 = vmatpush1.bf16.msra.mxu0 0
        %1085 = vmatprep.subr.bf16.mxu0 0
        %1086 = vmatpush1.bf16.msra.mxu0 0
        %1087 = vmatprep.subr.bf16.mxu0 0
        %1088 = vmatpush1.bf16.msra.mxu0 0
        %1089 = vmatprep.subr.bf16.mxu0 0
        %1090 = vmatpush1.bf16.msra.mxu0 0
        %1091 = vmatprep.subr.bf16.mxu0 0
        %1092 = vmatpush1.bf16.msra.mxu0 0
        %1093 = vmatprep.subr.bf16.mxu0 0
        %1094 = vmatpush1.bf16.msra.mxu0 0
        %1095 = vmatprep.subr.bf16.mxu0 0
        %1096 = vmatpush1.bf16.msra.mxu0 0
        %1097 = vmatprep.subr.bf16.mxu0 0
        %1098 = vmatpush1.bf16.msra.mxu0 0
        %1099 = vmatprep.subr.bf16.mxu0 0
        %1100 = vmatpush1.bf16.msra.mxu0 0
        %1101 = vmatprep.mubr.bf16.mxu0 0
        %1102 = vmatmul.mubr.bf16.gmra.mrb[0].mxu0 %v422
        %v1103 = vpop.f32.mrb[0].mxu0
        %v1104 = vadd.f32 0.0, %v1103
        %v1105 = vpop.f32.mrb[0].mxu0
        %v1106 = vadd.f32 0.0, %v1105
        %v1107 = vpop.f32.mrb[0].mxu0
        %v1108 = vpop.f32.mrb[0].mxu0
        %1109 = vdwg.mxu0
        %1110 = vmatprep.subr.bf16.mxu0 %v1040
        %1111 = vmatpush1.bf16.msra.mxu0 %v1039
        %1112 = vmatprep.subr.bf16.mxu0 %v1044
        %1113 = vmatpush1.bf16.msra.mxu0 %v1043
        %1114 = vmatprep.subr.bf16.mxu0 %v1067
        %1115 = vmatpush1.bf16.msra.mxu0 %v1064
        %1116 = vmatprep.subr.bf16.mxu0 0
        %1117 = vmatpush1.bf16.msra.mxu0 0
        %1118 = vmatprep.subr.bf16.mxu0 0
        %1119 = vmatpush1.bf16.msra.mxu0 0
        %1120 = vmatprep.subr.bf16.mxu0 0
        %1121 = vmatpush1.bf16.msra.mxu0 0
        %1122 = vmatprep.subr.bf16.mxu0 0
        %1123 = vmatpush1.bf16.msra.mxu0 0
        %1124 = vmatprep.subr.bf16.mxu0 0
        %1125 = vmatpush1.bf16.msra.mxu0 0
        %1126 = vmatprep.subr.bf16.mxu0 0
        %1127 = vmatpush1.bf16.msra.mxu0 0
        %1128 = vmatprep.subr.bf16.mxu0 0
        %1129 = vmatpush1.bf16.msra.mxu0 0
        %1130 = vmatprep.subr.bf16.mxu0 0
        %1131 = vmatpush1.bf16.msra.mxu0 0
        %1132 = vmatprep.subr.bf16.mxu0 0
        %1133 = vmatpush1.bf16.msra.mxu0 0
        %1134 = vmatprep.subr.bf16.mxu0 0
        %1135 = vmatpush1.bf16.msra.mxu0 0
        %1136 = vmatprep.subr.bf16.mxu0 0
        %1137 = vmatpush1.bf16.msra.mxu0 0
        %1138 = vmatprep.subr.bf16.mxu0 0
        %1139 = vmatpush1.bf16.msra.mxu0 0
        %1140 = vmatprep.subr.bf16.mxu0 0
        %1141 = vmatpush1.bf16.msra.mxu0 0
        %1142 = vmatprep.mubr.bf16.mxu0 0
        %1143 = vmatmul.mubr.bf16.gmra.mrb[0].mxu0 %v422
        %v1144 = vpop.f32.mrb[0].mxu0
        %v1145 = vadd.f32 0.0, %v1144
        %v1146 = vpop.f32.mrb[0].mxu0
        %v1147 = vadd.f32 0.0, %v1146
        %v1148 = vpop.f32.mrb[0].mxu0
        %v1149 = vpop.f32.mrb[0].mxu0
        %1150 = vdwg.mxu0
        %v1151 = vmax.f32 %v992, %v1104
        %v1152 = vmax.f32 %v993, %v1106
        %v1153 = vmax.f32 %v994, %v1145
        %v1154 = vmax.f32 %v995, %v1147
        %v1155 = vld [vmem:[%s2] sm:$0xf]
        %v1157 = vlaneseq
        %v1158 = vshrl.u32 %v1157, 7
        %v1159 = vsub.s32 0, %v1158
        %v1160 = vrot.slane %v1155, %v1159
        %v1161 = vlaneseq
        %v1162 = vshrl.u32 %v1161, 7
        %v1163 = vsub.s32 1, %v1162
        %v1164 = vrot.slane %v1155, %v1163
        %v1165 = vlaneseq
        %v1166 = vshrl.u32 %v1165, 7
        %v1167 = vsub.s32 2, %v1166
        %v1168 = vrot.slane %v1155, %v1167
        %v1169 = vlaneseq
        %v1170 = vshrl.u32 %v1169, 7
        %v1171 = vsub.s32 3, %v1170
        %v1172 = vrot.slane %v1155, %v1171
        %v1177 = vadd.f32 %v1151, %v1160
        %v1178 = vadd.f32 %v1152, %v1164
        %v1179 = vadd.f32 %v1153, %v1168
        %v1180 = vadd.f32 %v1154, %v1172
        %v1181 = vmax.f32 %v1177, 0.0
        %v1182 = vmax.f32 %v1178, 0.0
        %v1183 = vmax.f32 %v1179, 0.0
        %v1184 = vmax.f32 %v1180, 0.0
        %v1185 = vpack.c.bf16 %v1181, %v1181
        %v1186 = vpack.c.bf16 %v1182, %v1182
        %v1187 = vpack.c.bf16 %v1183, %v1183
        %v1188 = vpack.c.bf16 %v1184, %v1184
        %v1189 = vld [vmem:[#allocation4] sm:$0xf]
        %v1190 = vld [vmem:[#allocation4 + $0x4] sm:$0xf]
        %v1191 = vld [vmem:[#allocation4 + $0x8] sm:$0xf]
        %v1192 = vld [vmem:[#allocation4 + $0xc] sm:$0xf]
        %v1193 = vld [vmem:[#allocation4 + $0x10] sm:$0xf]
        %v1194 = vld [vmem:[#allocation4 + $0x14] sm:$0xf]
        %v1195 = vld [vmem:[#allocation4 + $0x18] sm:$0xf]
        %v1196 = vld [vmem:[#allocation4 + $0x1c] sm:$0xf]
        %v1197 = vld [vmem:[#allocation4 + $0x20] sm:$0xf]
        %v1198 = vld [vmem:[#allocation4 + $0x24] sm:$0xf]
        %v1199 = vld [vmem:[#allocation4 + $0x28] sm:$0xf]
        %v1200 = vld [vmem:[#allocation4 + $0x2c] sm:$0xf]
        %v1201 = vld [vmem:[#allocation4 + $0x30] sm:$0xf]
        %v1202 = vld [vmem:[#allocation4 + $0x34] sm:$0xf]
        %v1203 = vld [vmem:[#allocation4 + $0x38] sm:$0xf]
        %v1204 = vld [vmem:[#allocation4 + $0x3c] sm:$0xf]
        %v1205 = vld [vmem:[#allocation4 + $0x40] sm:$0xf]
        %v1206 = vld [vmem:[#allocation4 + $0x44] sm:$0xf]
        %v1207 = vld [vmem:[#allocation4 + $0x48] sm:$0xf]
        %v1208 = vld [vmem:[#allocation4 + $0x4c] sm:$0xf]
        %v1209 = vld [vmem:[#allocation4 + $0x50] sm:$0xf]
        %v1210 = vld [vmem:[#allocation4 + $0x54] sm:$0xf]
        %v1211 = vld [vmem:[#allocation4 + $0x58] sm:$0xf]
        %v1212 = vld [vmem:[#allocation4 + $0x5c] sm:$0xf]
        %v1213 = vld [vmem:[#allocation4 + $0x60] sm:$0xf]
        %v1214 = vld [vmem:[#allocation4 + $0x64] sm:$0xf]
        %v1215 = vld [vmem:[#allocation4 + $0x68] sm:$0xf]
        %v1216 = vld [vmem:[#allocation4 + $0x6c] sm:$0xf]
        %v1217 = vld [vmem:[#allocation4 + $0x70] sm:$0xf]
        %v1218 = vld [vmem:[#allocation4 + $0x74] sm:$0xf]
        %v1219 = vld [vmem:[#allocation4 + $0x78] sm:$0xf]
        %v1220 = vld [vmem:[#allocation4 + $0x7c] sm:$0xf]
        %v1221 = vld [vmem:[#allocation4 + $0x80] sm:$0xf]
        %v1222 = vld [vmem:[#allocation4 + $0x84] sm:$0xf]
        %v1223 = vld [vmem:[#allocation4 + $0x88] sm:$0xf]
        %v1224 = vld [vmem:[#allocation4 + $0x8c] sm:$0xf]
        %v1225 = vld [vmem:[#allocation4 + $0x90] sm:$0xf]
        %v1226 = vld [vmem:[#allocation4 + $0x94] sm:$0xf]
        %v1227 = vld [vmem:[#allocation4 + $0x98] sm:$0xf]
        %v1228 = vld [vmem:[#allocation4 + $0x9c] sm:$0xf]
        %v1229 = vld [vmem:[#allocation4 + $0xa0] sm:$0xf]
        %v1230 = vld [vmem:[#allocation4 + $0xa4] sm:$0xf]
        %v1231 = vld [vmem:[#allocation4 + $0xa8] sm:$0xf]
        %v1232 = vld [vmem:[#allocation4 + $0xac] sm:$0xf]
        %v1233 = vld [vmem:[#allocation4 + $0xb0] sm:$0xf]
        %v1234 = vld [vmem:[#allocation4 + $0xb4] sm:$0xf]
        %v1235 = vld [vmem:[#allocation4 + $0xb8] sm:$0xf]
        %v1236 = vld [vmem:[#allocation4 + $0xbc] sm:$0xf]
        %v1237 = vld [vmem:[#allocation4 + $0xc0] sm:$0xf]
        %v1238 = vld [vmem:[#allocation4 + $0xc4] sm:$0xf]
        %v1239 = vld [vmem:[#allocation4 + $0xc8] sm:$0xf]
        %v1240 = vld [vmem:[#allocation4 + $0xcc] sm:$0xf]
        %v1241 = vld [vmem:[#allocation4 + $0xd0] sm:$0xf]
        %v1242 = vld [vmem:[#allocation4 + $0xd4] sm:$0xf]
        %v1243 = vld [vmem:[#allocation4 + $0xd8] sm:$0xf]
        %v1244 = vld [vmem:[#allocation4 + $0xdc] sm:$0xf]
        %v1245 = vld [vmem:[#allocation4 + $0xe0] sm:$0xf]
        %v1246 = vld [vmem:[#allocation4 + $0xe4] sm:$0xf]
        %v1247 = vld [vmem:[#allocation4 + $0xe8] sm:$0xf]
        %v1248 = vld [vmem:[#allocation4 + $0xec] sm:$0xf]
        %v1249 = vld [vmem:[#allocation4 + $0xf0] sm:$0xf]
        %v1250 = vld [vmem:[#allocation4 + $0xf4] sm:$0xf]
        %v1251 = vld [vmem:[#allocation4 + $0xf8] sm:$0xf]
        %v1252 = vld [vmem:[#allocation4 + $0xfc] sm:$0xf]
        %v1253 = vld [vmem:[%s4] sm:$0x1]
        %v1255 = vlaneseq
        %v1256 = vshrl.u32 %v1255, 7
        %v1257 = vsub.s32 0, %v1256
        %v1258 = vrot.slane %v1253, %v1257
        %v1324 = vunpack.c.l.b16 %v1189
        %v1325 = vunpack.c.l.b16 %v1190
        %v1326 = vunpack.c.l.b16 %v1191
        %v1327 = vunpack.c.l.b16 %v1192
        %v1328 = vunpack.c.l.b16 %v1193
        %v1329 = vunpack.c.l.b16 %v1194
        %v1330 = vunpack.c.l.b16 %v1195
        %v1331 = vunpack.c.l.b16 %v1196
        %v1332 = vunpack.c.l.b16 %v1197
        %v1333 = vunpack.c.l.b16 %v1198
        %v1334 = vunpack.c.l.b16 %v1199
        %v1335 = vunpack.c.l.b16 %v1200
        %v1336 = vunpack.c.l.b16 %v1201
        %v1337 = vunpack.c.l.b16 %v1202
        %v1338 = vunpack.c.l.b16 %v1203
        %v1339 = vunpack.c.l.b16 %v1204
        %v1340 = vunpack.c.l.b16 %v1205
        %v1341 = vunpack.c.l.b16 %v1206
        %v1342 = vunpack.c.l.b16 %v1207
        %v1343 = vunpack.c.l.b16 %v1208
        %v1344 = vunpack.c.l.b16 %v1209
        %v1345 = vunpack.c.l.b16 %v1210
        %v1346 = vunpack.c.l.b16 %v1211
        %v1347 = vunpack.c.l.b16 %v1212
        %v1348 = vunpack.c.l.b16 %v1213
        %v1349 = vunpack.c.l.b16 %v1214
        %v1350 = vunpack.c.l.b16 %v1215
        %v1351 = vunpack.c.l.b16 %v1216
        %v1352 = vunpack.c.l.b16 %v1217
        %v1353 = vunpack.c.l.b16 %v1218
        %v1354 = vunpack.c.l.b16 %v1219
        %v1355 = vunpack.c.l.b16 %v1220
        %v1356 = vunpack.c.l.b16 %v1221
        %v1357 = vunpack.c.l.b16 %v1222
        %v1358 = vunpack.c.l.b16 %v1223
        %v1359 = vunpack.c.l.b16 %v1224
        %v1360 = vunpack.c.l.b16 %v1225
        %v1361 = vunpack.c.l.b16 %v1226
        %v1362 = vunpack.c.l.b16 %v1227
        %v1363 = vunpack.c.l.b16 %v1228
        %v1364 = vunpack.c.l.b16 %v1229
        %v1365 = vunpack.c.l.b16 %v1230
        %v1366 = vunpack.c.l.b16 %v1231
        %v1367 = vunpack.c.l.b16 %v1232
        %v1368 = vunpack.c.l.b16 %v1233
        %v1369 = vunpack.c.l.b16 %v1234
        %v1370 = vunpack.c.l.b16 %v1235
        %v1371 = vunpack.c.l.b16 %v1236
        %v1372 = vunpack.c.l.b16 %v1237
        %v1373 = vunpack.c.l.b16 %v1238
        %v1374 = vunpack.c.l.b16 %v1239
        %v1375 = vunpack.c.l.b16 %v1240
        %v1376 = vunpack.c.l.b16 %v1241
        %v1377 = vunpack.c.l.b16 %v1242
        %v1378 = vunpack.c.l.b16 %v1243
        %v1379 = vunpack.c.l.b16 %v1244
        %v1380 = vunpack.c.l.b16 %v1245
        %v1381 = vunpack.c.l.b16 %v1246
        %v1382 = vunpack.c.l.b16 %v1247
        %v1383 = vunpack.c.l.b16 %v1248
        %v1384 = vunpack.c.l.b16 %v1249
        %v1385 = vunpack.c.l.b16 %v1250
        %v1386 = vunpack.c.l.b16 %v1251
        %v1387 = vunpack.c.l.b16 %v1252
        %v1388 = vpack.c.b16 %v1325, %v1324
        %v1389 = vpack.c.b16 %v1327, %v1326
        %v1390 = vpack.c.b16 %v1329, %v1328
        %v1391 = vpack.c.b16 %v1331, %v1330
        %v1392 = vpack.c.b16 %v1333, %v1332
        %v1393 = vpack.c.b16 %v1335, %v1334
        %v1394 = vpack.c.b16 %v1337, %v1336
        %v1395 = vpack.c.b16 %v1339, %v1338
        %v1396 = vpack.c.b16 %v1341, %v1340
        %v1397 = vpack.c.b16 %v1343, %v1342
        %v1398 = vpack.c.b16 %v1345, %v1344
        %v1399 = vpack.c.b16 %v1347, %v1346
        %v1400 = vpack.c.b16 %v1349, %v1348
        %v1401 = vpack.c.b16 %v1351, %v1350
        %v1402 = vpack.c.b16 %v1353, %v1352
        %v1403 = vpack.c.b16 %v1355, %v1354
        %v1404 = vpack.c.b16 %v1357, %v1356
        %v1405 = vpack.c.b16 %v1359, %v1358
        %v1406 = vpack.c.b16 %v1361, %v1360
        %v1407 = vpack.c.b16 %v1363, %v1362
        %v1408 = vpack.c.b16 %v1365, %v1364
        %v1409 = vpack.c.b16 %v1367, %v1366
        %v1410 = vpack.c.b16 %v1369, %v1368
        %v1411 = vpack.c.b16 %v1371, %v1370
        %v1412 = vpack.c.b16 %v1373, %v1372
        %v1413 = vpack.c.b16 %v1375, %v1374
        %v1414 = vpack.c.b16 %v1377, %v1376
        %v1415 = vpack.c.b16 %v1379, %v1378
        %v1416 = vpack.c.b16 %v1381, %v1380
        %v1417 = vpack.c.b16 %v1383, %v1382
        %v1418 = vpack.c.b16 %v1385, %v1384
        %v1419 = vpack.c.b16 %v1387, %v1386
        %1452 = vmatprep.subr.bf16.mxu0 0
        %1453 = vmatpush1.bf16.msra.mxu0 %v1388
        %1454 = vmatprep.subr.bf16.mxu0 0
        %1455 = vmatpush1.bf16.msra.mxu0 %v1389
        %1456 = vmatprep.subr.bf16.mxu0 0
        %1457 = vmatpush1.bf16.msra.mxu0 %v1390
        %1458 = vmatprep.subr.bf16.mxu0 0
        %1459 = vmatpush1.bf16.msra.mxu0 %v1391
        %1460 = vmatprep.subr.bf16.mxu0 0
        %1461 = vmatpush1.bf16.msra.mxu0 %v1392
        %1462 = vmatprep.subr.bf16.mxu0 0
        %1463 = vmatpush1.bf16.msra.mxu0 %v1393
        %1464 = vmatprep.subr.bf16.mxu0 0
        %1465 = vmatpush1.bf16.msra.mxu0 %v1394
        %1466 = vmatprep.subr.bf16.mxu0 0
        %1467 = vmatpush1.bf16.msra.mxu0 %v1395
        %1468 = vmatprep.subr.bf16.mxu0 0
        %1469 = vmatpush1.bf16.msra.mxu0 %v1396
        %1470 = vmatprep.subr.bf16.mxu0 0
        %1471 = vmatpush1.bf16.msra.mxu0 %v1397
        %1472 = vmatprep.subr.bf16.mxu0 0
        %1473 = vmatpush1.bf16.msra.mxu0 %v1398
        %1474 = vmatprep.subr.bf16.mxu0 0
        %1475 = vmatpush1.bf16.msra.mxu0 %v1399
        %1476 = vmatprep.subr.bf16.mxu0 0
        %1477 = vmatpush1.bf16.msra.mxu0 %v1400
        %1478 = vmatprep.subr.bf16.mxu0 0
        %1479 = vmatpush1.bf16.msra.mxu0 %v1401
        %1480 = vmatprep.subr.bf16.mxu0 0
        %1481 = vmatpush1.bf16.msra.mxu0 %v1402
        %1482 = vmatprep.subr.bf16.mxu0 0
        %1483 = vmatpush1.bf16.msra.mxu0 %v1403
        %1484 = vmatprep.mubr.bf16.mxu0 %v1186
        %1485 = vmatmul.mubr.bf16.gmra.mrb[0].mxu0 %v1185
        %v1486 = vpop.f32.mrb[0].mxu0
        %v1487 = vadd.f32 %v1258, %v1486
        %v1488 = vpop.f32.mrb[0].mxu0
        %v1489 = vpop.f32.mrb[0].mxu0
        %v1490 = vpop.f32.mrb[0].mxu0
        %1491 = vdwg.mxu0
        %1492 = vmatprep.subr.bf16.mxu0 0
        %1493 = vmatpush1.bf16.msra.mxu0 %v1404
        %1494 = vmatprep.subr.bf16.mxu0 0
        %1495 = vmatpush1.bf16.msra.mxu0 %v1405
        %1496 = vmatprep.subr.bf16.mxu0 0
        %1497 = vmatpush1.bf16.msra.mxu0 %v1406
        %1498 = vmatprep.subr.bf16.mxu0 0
        %1499 = vmatpush1.bf16.msra.mxu0 %v1407
        %1500 = vmatprep.subr.bf16.mxu0 0
        %1501 = vmatpush1.bf16.msra.mxu0 %v1408
        %1502 = vmatprep.subr.bf16.mxu0 0
        %1503 = vmatpush1.bf16.msra.mxu0 %v1409
        %1504 = vmatprep.subr.bf16.mxu0 0
        %1505 = vmatpush1.bf16.msra.mxu0 %v1410
        %1506 = vmatprep.subr.bf16.mxu0 0
        %1507 = vmatpush1.bf16.msra.mxu0 %v1411
        %1508 = vmatprep.subr.bf16.mxu0 0
        %1509 = vmatpush1.bf16.msra.mxu0 %v1412
        %1510 = vmatprep.subr.bf16.mxu0 0
        %1511 = vmatpush1.bf16.msra.mxu0 %v1413
        %1512 = vmatprep.subr.bf16.mxu0 0
        %1513 = vmatpush1.bf16.msra.mxu0 %v1414
        %1514 = vmatprep.subr.bf16.mxu0 0
        %1515 = vmatpush1.bf16.msra.mxu0 %v1415
        %1516 = vmatprep.subr.bf16.mxu0 0
        %1517 = vmatpush1.bf16.msra.mxu0 %v1416
        %1518 = vmatprep.subr.bf16.mxu0 0
        %1519 = vmatpush1.bf16.msra.mxu0 %v1417
        %1520 = vmatprep.subr.bf16.mxu0 0
        %1521 = vmatpush1.bf16.msra.mxu0 %v1418
        %1522 = vmatprep.subr.bf16.mxu0 0
        %1523 = vmatpush1.bf16.msra.mxu0 %v1419
        %1524 = vmatprep.mubr.bf16.mxu0 %v1188
        %1525 = vmatmul.mubr.bf16.gmra.mrb[0].mxu0 %v1187
        %v1526 = vpop.f32.mrb[0].mxu0
        %v1527 = vadd.f32 %v1487, %v1526
        %v1528 = vpop.f32.mrb[0].mxu0
        %v1529 = vpop.f32.mrb[0].mxu0
        %v1530 = vpop.f32.mrb[0].mxu0
        %1531 = vdwg.mxu0
        %v1532 = vmax.f32 %v1527, 0.0
        %v1533 = vld [vmem:[%s5] sm:$0xff]
        %v1534 = vld [vmem:[%s5 + $0x8] sm:$0xff]
        %v1535 = vld [vmem:[%s6] sm:$0x1]
        %v1537 = vlaneseq
        %v1538 = vshrl.u32 %v1537, 7
        %v1539 = vsub.s32 0, %v1538
        %v1540 = vrot.slane %v1535, %v1539
        %vm1542 = vcmask 130048
        %v1544 = vsel %vm1542, %v1532, 0
        %1546 = vmatprep.subr.mxu0 0.0
        %1547 = vmatpush1.msra.mxu0 %v1533
        %1548 = vmatprep.subr.mxu0 0.0
        %1549 = vmatpush1.msra.mxu0 %v1534
        %1550 = vmatprep.subr.mxu0 0.0
        %1551 = vmatpush1.msra.mxu0 0.0
        %1552 = vmatprep.subr.mxu0 0.0
        %1553 = vmatpush1.msra.mxu0 0.0
        %1554 = vmatprep.subr.mxu0 0.0
        %1555 = vmatpush1.msra.mxu0 0.0
        %1556 = vmatprep.subr.mxu0 0.0
        %1557 = vmatpush1.msra.mxu0 0.0
        %1558 = vmatprep.subr.mxu0 0.0
        %1559 = vmatpush1.msra.mxu0 0.0
        %1560 = vmatprep.subr.mxu0 0.0
        %1561 = vmatpush1.msra.mxu0 0.0
        %1562 = vmatprep.subr.mxu0 0.0
        %1563 = vmatpush1.msra.mxu0 0.0
        %1564 = vmatprep.subr.mxu0 0.0
        %1565 = vmatpush1.msra.mxu0 0.0
        %1566 = vmatprep.subr.mxu0 0.0
        %1567 = vmatpush1.msra.mxu0 0.0
        %1568 = vmatprep.subr.mxu0 0.0
        %1569 = vmatpush1.msra.mxu0 0.0
        %1570 = vmatprep.subr.mxu0 0.0
        %1571 = vmatpush1.msra.mxu0 0.0
        %1572 = vmatprep.subr.mxu0 0.0
        %1573 = vmatpush1.msra.mxu0 0.0
        %1574 = vmatprep.subr.mxu0 0.0
        %1575 = vmatpush1.msra.mxu0 0.0
        %1576 = vmatprep.subr.mxu0 0.0
        %1577 = vmatpush1.msra.mxu0 0.0
        %1578 = vmatprep.subr.mxu0 0.0
        %1579 = vmatpush1.msra.mxu0 0.0
        %1580 = vmatprep.subr.mxu0 0.0
        %1581 = vmatpush1.msra.mxu0 0.0
        %1582 = vmatprep.subr.mxu0 0.0
        %1583 = vmatpush1.msra.mxu0 0.0
        %1584 = vmatprep.subr.mxu0 0.0
        %1585 = vmatpush1.msra.mxu0 0.0
        %1586 = vmatprep.subr.mxu0 0.0
        %1587 = vmatpush1.msra.mxu0 0.0
        %1588 = vmatprep.subr.mxu0 0.0
        %1589 = vmatpush1.msra.mxu0 0.0
        %1590 = vmatprep.subr.mxu0 0.0
        %1591 = vmatpush1.msra.mxu0 0.0
        %1592 = vmatprep.subr.mxu0 0.0
        %1593 = vmatpush1.msra.mxu0 0.0
        %1594 = vmatprep.subr.mxu0 0.0
        %1595 = vmatpush1.msra.mxu0 0.0
        %1596 = vmatprep.subr.mxu0 0.0
        %1597 = vmatpush1.msra.mxu0 0.0
        %1598 = vmatprep.subr.mxu0 0.0
        %1599 = vmatpush1.msra.mxu0 0.0
        %1600 = vmatprep.subr.mxu0 0.0
        %1601 = vmatpush1.msra.mxu0 0.0
        %1602 = vmatprep.subr.mxu0 0.0
        %1603 = vmatpush1.msra.mxu0 0.0
        %1604 = vmatprep.subr.mxu0 0.0
        %1605 = vmatpush1.msra.mxu0 0.0
        %1606 = vmatprep.subr.mxu0 0.0
        %1607 = vmatpush1.msra.mxu0 0.0
        %1608 = vmatprep.subr.mxu0 0.0
        %1609 = vmatpush1.msra.mxu0 0.0
        %1610 = vmatprep.mubr.f32.mxu0 0.0
        %1611 = vmatmul.mubr.f32.gmra.mrb[0].mxu0 %v1544
        %v1612 = vpop.f32.mrb[0].mxu0
        %v1613 = vadd.f32 %v1540, %v1612
        %v1614 = vpop.f32.mrb[0].mxu0
        %1615 = vdwg.mxu0
        %v1616 = vmax.f32 %v1613, 0.0
        %v1617 = vld [vmem:[%s7] sm:$0xff]
        %v1618 = vld [vmem:[%s8] sm:$0x1]
        %v1620 = vlaneseq
        %v1621 = vshrl.u32 %v1620, 7
        %v1622 = vsub.s32 0, %v1621
        %v1623 = vrot.slane %v1618, %v1622
        %vm1625 = vcmask 64512
        %v1627 = vsel %vm1625, %v1616, 0
        %1629 = vmatprep.subr.mxu0 0.0
        %1630 = vmatpush1.msra.mxu0 %v1617
        %1631 = vmatprep.subr.mxu0 0.0
        %1632 = vmatpush1.msra.mxu0 0.0
        %1633 = vmatprep.subr.mxu0 0.0
        %1634 = vmatpush1.msra.mxu0 0.0
        %1635 = vmatprep.subr.mxu0 0.0
        %1636 = vmatpush1.msra.mxu0 0.0
        %1637 = vmatprep.subr.mxu0 0.0
        %1638 = vmatpush1.msra.mxu0 0.0
        %1639 = vmatprep.subr.mxu0 0.0
        %1640 = vmatpush1.msra.mxu0 0.0
        %1641 = vmatprep.subr.mxu0 0.0
        %1642 = vmatpush1.msra.mxu0 0.0
        %1643 = vmatprep.subr.mxu0 0.0
        %1644 = vmatpush1.msra.mxu0 0.0
        %1645 = vmatprep.subr.mxu0 0.0
        %1646 = vmatpush1.msra.mxu0 0.0
        %1647 = vmatprep.subr.mxu0 0.0
        %1648 = vmatpush1.msra.mxu0 0.0
        %1649 = vmatprep.subr.mxu0 0.0
        %1650 = vmatpush1.msra.mxu0 0.0
        %1651 = vmatprep.subr.mxu0 0.0
        %1652 = vmatpush1.msra.mxu0 0.0
        %1653 = vmatprep.subr.mxu0 0.0
        %1654 = vmatpush1.msra.mxu0 0.0
        %1655 = vmatprep.subr.mxu0 0.0
        %1656 = vmatpush1.msra.mxu0 0.0
        %1657 = vmatprep.subr.mxu0 0.0
        %1658 = vmatpush1.msra.mxu0 0.0
        %1659 = vmatprep.subr.mxu0 0.0
        %1660 = vmatpush1.msra.mxu0 0.0
        %1661 = vmatprep.subr.mxu0 0.0
        %1662 = vmatpush1.msra.mxu0 0.0
        %1663 = vmatprep.subr.mxu0 0.0
        %1664 = vmatpush1.msra.mxu0 0.0
        %1665 = vmatprep.subr.mxu0 0.0
        %1666 = vmatpush1.msra.mxu0 0.0
        %1667 = vmatprep.subr.mxu0 0.0
        %1668 = vmatpush1.msra.mxu0 0.0
        %1669 = vmatprep.subr.mxu0 0.0
        %1670 = vmatpush1.msra.mxu0 0.0
        %1671 = vmatprep.subr.mxu0 0.0
        %1672 = vmatpush1.msra.mxu0 0.0
        %1673 = vmatprep.subr.mxu0 0.0
        %1674 = vmatpush1.msra.mxu0 0.0
        %1675 = vmatprep.subr.mxu0 0.0
        %1676 = vmatpush1.msra.mxu0 0.0
        %1677 = vmatprep.subr.mxu0 0.0
        %1678 = vmatpush1.msra.mxu0 0.0
        %1679 = vmatprep.subr.mxu0 0.0
        %1680 = vmatpush1.msra.mxu0 0.0
        %1681 = vmatprep.subr.mxu0 0.0
        %1682 = vmatpush1.msra.mxu0 0.0
        %1683 = vmatprep.subr.mxu0 0.0
        %1684 = vmatpush1.msra.mxu0 0.0
        %1685 = vmatprep.subr.mxu0 0.0
        %1686 = vmatpush1.msra.mxu0 0.0
        %1687 = vmatprep.subr.mxu0 0.0
        %1688 = vmatpush1.msra.mxu0 0.0
        %1689 = vmatprep.subr.mxu0 0.0
        %1690 = vmatpush1.msra.mxu0 0.0
        %1691 = vmatprep.subr.mxu0 0.0
        %1692 = vmatpush1.msra.mxu0 0.0
        %1693 = vmatprep.mubr.f32.mxu0 0.0
        %1694 = vmatmul.mubr.f32.gmra.mrb[0].mxu0 %v1627
        %v1695 = vpop.f32.mrb[0].mxu0
        %v1696 = vadd.f32 %v1623, %v1695
        %v1697 = vpop.f32.mrb[0].mxu0
        %1698 = vdwg.mxu0
        %vm1699 = vcmask 31744
        %1700 = vst.msk [vmem:[%s357] sm:$0xff] %vm1699, %v1696
        %p1701 = scmp.lt.s32.totalorder %s22, 1
        %s1702 = scalar_select %p1701, %s22, 1
        %s1703 = smul.addr %s1702, 8
        %s1704 = scalar_lea.vmem %s9, %s1703
        // Predicated region
        $region65: #{eeg_gat_ablation_forward.1} parent=55 // pred_check
          %p1705 = pneg %p234
        $region66: #{eeg_gat_ablation_forward.1} parent=55 // pred_check_branch
          %1707 = sbr.rel (%p1705) target = $region68
        $region67: #{eeg_gat_ablation_forward.1} parent=55 // pred_region
          _
        $region68: #{eeg_gat_ablation_forward.1} parent=55 // pred_fallthru
          _
      $region56: #{eeg_gat_ablation_forward.1} parent=5 // pred_fallthru
        _
      %p1708 = scmp.le.s32.totalorder 2, %s17
      // Predicated region
      $region69: #{eeg_gat_ablation_forward.1} parent=5 // pred_check
        %p1709 = pneg %p1708
      $region70: #{eeg_gat_ablation_forward.1} parent=5 // pred_check_branch
        %1711 = sbr.rel (%p1709) target = $region72
      $region71: #{eeg_gat_ablation_forward.1} parent=5 // pred_region
        %s1712 = ssub.s32 %s17, 2
        // Predicated region
        $region73: #{eeg_gat_ablation_forward.1} parent=71 // pred_check
          %p1713 = pneg %p240
        $region74: #{eeg_gat_ablation_forward.1} parent=71 // pred_check_branch
          %1715 = sbr.rel (%p1713) target = $region76
        $region75: #{eeg_gat_ablation_forward.1} parent=71 // pred_region
          %p1716 = scmp.lt.s32.totalorder %s23, 1
          %s1717 = scalar_select %p1716, %s23, 1
          %s1718 = smul.addr %s1717, 8
          %s1719 = scalar_lea.vmem %s9, %s1718
        $region76: #{eeg_gat_ablation_forward.1} parent=71 // pred_fallthru
          _
      $region72: #{eeg_gat_ablation_forward.1} parent=5 // pred_fallthru
        _
    $region6: #{eeg_gat_ablation_forward.1} parent=1 // loop_footer
      %s21 = sadd.s32 1, %s17
    $region7: #{eeg_gat_ablation_forward.1} parent=1 // loop_footer_branch
      %16 = sbr.rel target = $region3
    $region8: #{eeg_gat_ablation_forward.1} parent=1 // loop_exit
      _
    %1720 = vsyncpa [#allocation3], 1
    %s1721 = scalar_lea.sflag [#allocation3], 1
    %1722 = vsyncpa %s1721, 1
    %1723 = vsyncpa [#allocation5], 1

</llo_original>
